<compile_context>
chip_gen: v7x
topology: tpu7x:2x2x1
jax: 0.10.0
libtpu: 0.0.40
codegen_flags: <defaults>
</compile_context>

<pallas_src>
import functools

import jax
import jax.numpy as jnp
from jax.experimental import pallas as pl
from jax.experimental.pallas import tpu as pltpu


def lstm_kernel(x_ref, wx_ref, wh_ref, bg_ref, woh_ref, woc_ref, bo_ref,
                out_ref, hid_ref, *, hidden_size, seq_len):
    B, S, D = x_ref.shape
    H = hidden_size
    assert S == seq_len

    # ---- Hoisted input projection: one MXU pass for all timesteps ----------
    # (B*S, D) @ (D, 4H) + bg  ->  (B, S, 4H).  Both reshapes are pure vreg
    # re-indexing (leading-dim <-> sublane merges), no data movement.
    x2d = x_ref[...].reshape(B * S, D)
    xp = (jnp.dot(x2d, wx_ref[...], preferred_element_type=jnp.float32)
          + bg_ref[...]).reshape(B, S, 4 * H)

    wh = wh_ref[...]                                  # (H, 4H), loaded once

    # ---- Recurrence: h/c carried in vregs, loop unrolled (S is small) ------
    h = jnp.zeros((B, H), jnp.float32)
    c = jnp.zeros((B, H), jnp.float32)
    for t in range(S):                                # static unroll
        gates = xp[:, t, :] + jnp.dot(h, wh, preferred_element_type=jnp.float32)
        # For production sizes pick H as a multiple of 128 so each gate slice
        # is lane-tile aligned (free view); at H=32 these are cheap extracts.
        i_g = jax.nn.sigmoid(gates[:, 0 * H:1 * H])
        f_g = jax.nn.sigmoid(gates[:, 1 * H:2 * H])
        o_g = jax.nn.sigmoid(gates[:, 2 * H:3 * H])
        c_t = jnp.tanh(gates[:, 3 * H:4 * H])
        c = f_g * c + i_g * c_t
        h = o_g * jnp.tanh(c)

    # ---- Output head: sigmoid(c22o([h, c])) as a VPU mul-add + lane reduce --
    logit = (jnp.sum(h * woh_ref[...] + c * woc_ref[...], axis=-1, keepdims=True)
             + bo_ref[...])
    out_ref[...] = jax.nn.sigmoid(logit)
    hid_ref[...] = h


def lstm_forward(x, params, hidden_size):
    """x: (batch, seq, input_size) f32 -> (output (batch, 1), hidden (batch, H))."""
    wx, wh, bg, wo, bo = params
    B, S, D = x.shape
    H = hidden_size
    # Split the output-head weight into the h-part and c-part (row vectors).
    woh = wo[:H].reshape(1, H)
    woc = wo[H:].reshape(1, H)

    kernel = functools.partial(lstm_kernel, hidden_size=H, seq_len=S)
    vmem = lambda: pl.BlockSpec(memory_space=pltpu.MemorySpace.VMEM)

    out, hid = pl.pallas_call(
        kernel,
        out_shape=(jax.ShapeDtypeStruct((B, 1), jnp.float32),
                   jax.ShapeDtypeStruct((B, H), jnp.float32)),
        in_specs=[vmem() for _ in range(7)],
        out_specs=(vmem(), vmem()),
    )(x, wx, wh, bg, woh, woc, bo)
    return out, hid


def init_params(key, input_size, hidden_size):
    """Deterministic init mimicking nn.Linear's U(-1/sqrt(fan_in), 1/sqrt(fan_in)).

    Gate weights are stored pre-split: wx (D, 4H) and wh (H, 4H), columns
    ordered [i | f | o | c_tilde]; applying them to x and h separately is
    mathematically identical to Linear(cat([x, h]))."""
    D, H = input_size, hidden_size
    fan_gate = D + H
    fan_out = 2 * H
    k1, k2, k3, k4, k5 = jax.random.split(key, 5)
    bound_g = 1.0 / jnp.sqrt(fan_gate)
    bound_o = 1.0 / jnp.sqrt(fan_out)
    wx = jax.random.uniform(k1, (D, 4 * H), jnp.float32, -bound_g, bound_g)
    wh = jax.random.uniform(k2, (H, 4 * H), jnp.float32, -bound_g, bound_g)
    bg = jax.random.uniform(k3, (1, 4 * H), jnp.float32, -bound_g, bound_g)
    wo = jax.random.uniform(k4, (2 * H, 1), jnp.float32, -bound_o, bound_o)
    bo = jax.random.uniform(k5, (1, 1), jnp.float32, -bound_o, bound_o)
    return wx, wh, bg, wo, bo


def lstm_reference(x, params, hidden_size):
    """Pure-JAX reference matching the PyTorch module's forward semantics."""
    wx, wh, bg, wo, bo = params
    B, S, D = x.shape
    H = hidden_size
    h = jnp.zeros((B, H), jnp.float32)
    c = jnp.zeros((B, H), jnp.float32)
    for t in range(S):
        gates = x[:, t, :] @ wx + h @ wh + bg      # == cat([x_t, h]) @ [wx; wh] + bg
        i = jax.nn.sigmoid(gates[:, 0 * H:1 * H])
        f = jax.nn.sigmoid(gates[:, 1 * H:2 * H])
        o = jax.nn.sigmoid(gates[:, 2 * H:3 * H])
        ct = jnp.tanh(gates[:, 3 * H:4 * H])
        c = f * c + i * ct
        h = o * jnp.tanh(c)
    out = jax.nn.sigmoid(jnp.concatenate([h, c], axis=1) @ wo + bo)
    return out, h


if __name__ == "__main__":
    batch, seq, input_size, hidden_size = 8, 8, 16, 32

    key = jax.random.PRNGKey(0)
    kx, kp = jax.random.split(key)
    x = jax.random.normal(kx, (batch, seq, input_size), jnp.float32)
    params = init_params(kp, input_size, hidden_size)

    out, hid = lstm_forward(x, params, hidden_size)
    out, hid = jax.block_until_ready(out), jax.block_until_ready(hid)

    ref_out, ref_hid = lstm_reference(x, params, hidden_size)
    assert out.shape == (batch, 1) and hid.shape == (batch, hidden_size)
    assert jnp.allclose(out, ref_out, atol=1e-5, rtol=1e-5)
    assert jnp.allclose(hid, ref_hid, atol=1e-5, rtol=1e-5)

    print("KERNEL_OK")
</pallas_src>

<mosaic_0001>
module attributes {stable_mosaic.version = 11 : i64} {
  func.func @lstm_kernel(%arg0: memref<8x8x16xf32, #tpu.memory_space<vmem>>, %arg1: memref<16x128xf32, #tpu.memory_space<vmem>>, %arg2: memref<32x128xf32, #tpu.memory_space<vmem>>, %arg3: memref<1x128xf32, #tpu.memory_space<vmem>>, %arg4: memref<1x32xf32, #tpu.memory_space<vmem>>, %arg5: memref<1x32xf32, #tpu.memory_space<vmem>>, %arg6: memref<1x1xf32, #tpu.memory_space<vmem>>, %arg7: memref<8x1xf32, #tpu.memory_space<vmem>>, %arg8: memref<8x32xf32, #tpu.memory_space<vmem>>) attributes {dimension_semantics = [], scalar_prefetch = 0 : i64, scratch_operands = 0 : i64, tpu.core_type = #tpu.core_type<tc>} {
    %c0 = arith.constant 0 : index
    %c0_0 = arith.constant 0 : index
    %c0_1 = arith.constant 0 : index
    %0 = vector.load %arg0[%c0, %c0_0, %c0_1] : memref<8x8x16xf32, #tpu.memory_space<vmem>>, vector<8x8x16xf32>
    %1 = vector.shape_cast %0 : vector<8x8x16xf32> to vector<64x16xf32>
    %c0_2 = arith.constant 0 : index
    %c0_3 = arith.constant 0 : index
    %2 = vector.load %arg1[%c0_2, %c0_3] : memref<16x128xf32, #tpu.memory_space<vmem>>, vector<16x128xf32>
    %cst = arith.constant dense<0.000000e+00> : vector<64x128xf32>
    %3 = tpu.matmul %1, %2, %cst {dimension_numbers = #tpu.dot_dimension_numbers<[1], [0], [0], [1], [0, 0, 1, 1], [], []>} : vector<64x16xf32>, vector<16x128xf32>, vector<64x128xf32> -> vector<64x128xf32>
    %c0_4 = arith.constant 0 : index
    %c0_5 = arith.constant 0 : index
    %4 = vector.load %arg3[%c0_4, %c0_5] : memref<1x128xf32, #tpu.memory_space<vmem>>, vector<1x128xf32>
    %5 = vector.broadcast %4 : vector<1x128xf32> to vector<64x128xf32>
    %6 = arith.addf %3, %5 : vector<64x128xf32>
    %7 = vector.shape_cast %6 : vector<64x128xf32> to vector<8x8x128xf32>
    %c0_6 = arith.constant 0 : index
    %c0_7 = arith.constant 0 : index
    %8 = vector.load %arg2[%c0_6, %c0_7] : memref<32x128xf32, #tpu.memory_space<vmem>>, vector<32x128xf32>
    %cst_8 = arith.constant 0.000000e+00 : f32
    %9 = vector.broadcast %cst_8 : f32 to vector<8x32xf32>
    %cst_9 = arith.constant 0.000000e+00 : f32
    %10 = vector.broadcast %cst_9 : f32 to vector<8x32xf32>
    %11 = vector.extract_strided_slice %7 {offsets = [0, 0, 0], sizes = [8, 1, 128], strides = [1, 1, 1]} : vector<8x8x128xf32> to vector<8x1x128xf32>
    %12 = vector.shape_cast %11 : vector<8x1x128xf32> to vector<8x128xf32>
    %cst_10 = arith.constant dense<0.000000e+00> : vector<8x128xf32>
    %13 = tpu.matmul %9, %8, %cst_10 {dimension_numbers = #tpu.dot_dimension_numbers<[1], [0], [0], [1], [0, 0, 1, 1], [], []>} : vector<8x32xf32>, vector<32x128xf32>, vector<8x128xf32> -> vector<8x128xf32>
    %14 = arith.addf %12, %13 : vector<8x128xf32>
    %15 = vector.extract_strided_slice %14 {offsets = [0, 0], sizes = [8, 32], strides = [1, 1]} : vector<8x128xf32> to vector<8x32xf32>
    %16 = arith.negf %15 : vector<8x32xf32>
    %17 = math.exp %16 : vector<8x32xf32>
    %cst_11 = arith.constant 1.000000e+00 : f32
    %18 = vector.broadcast %cst_11 : f32 to vector<8x32xf32>
    %19 = arith.addf %18, %17 : vector<8x32xf32>
    %20 = arith.divf %18, %19 : vector<8x32xf32>
    %21 = vector.extract_strided_slice %14 {offsets = [0, 32], sizes = [8, 32], strides = [1, 1]} : vector<8x128xf32> to vector<8x32xf32>
    %22 = arith.negf %21 : vector<8x32xf32>
    %23 = math.exp %22 : vector<8x32xf32>
    %cst_12 = arith.constant 1.000000e+00 : f32
    %24 = vector.broadcast %cst_12 : f32 to vector<8x32xf32>
    %25 = arith.addf %24, %23 : vector<8x32xf32>
    %26 = arith.divf %24, %25 : vector<8x32xf32>
    %27 = vector.extract_strided_slice %14 {offsets = [0, 64], sizes = [8, 32], strides = [1, 1]} : vector<8x128xf32> to vector<8x32xf32>
    %28 = arith.negf %27 : vector<8x32xf32>
    %29 = math.exp %28 : vector<8x32xf32>
    %cst_13 = arith.constant 1.000000e+00 : f32
    %30 = vector.broadcast %cst_13 : f32 to vector<8x32xf32>
    %31 = arith.addf %30, %29 : vector<8x32xf32>
    %32 = arith.divf %30, %31 : vector<8x32xf32>
    %33 = vector.extract_strided_slice %14 {offsets = [0, 96], sizes = [8, 32], strides = [1, 1]} : vector<8x128xf32> to vector<8x32xf32>
    %34 = math.tanh %33 : vector<8x32xf32>
    %35 = arith.mulf %26, %10 : vector<8x32xf32>
    %36 = arith.mulf %20, %34 : vector<8x32xf32>
    %37 = arith.addf %35, %36 : vector<8x32xf32>
    %38 = math.tanh %37 : vector<8x32xf32>
    %39 = arith.mulf %32, %38 : vector<8x32xf32>
    %40 = vector.extract_strided_slice %7 {offsets = [0, 1, 0], sizes = [8, 1, 128], strides = [1, 1, 1]} : vector<8x8x128xf32> to vector<8x1x128xf32>
    %41 = vector.shape_cast %40 : vector<8x1x128xf32> to vector<8x128xf32>
    %cst_14 = arith.constant dense<0.000000e+00> : vector<8x128xf32>
    %42 = tpu.matmul %39, %8, %cst_14 {dimension_numbers = #tpu.dot_dimension_numbers<[1], [0], [0], [1], [0, 0, 1, 1], [], []>} : vector<8x32xf32>, vector<32x128xf32>, vector<8x128xf32> -> vector<8x128xf32>
    %43 = arith.addf %41, %42 : vector<8x128xf32>
    %44 = vector.extract_strided_slice %43 {offsets = [0, 0], sizes = [8, 32], strides = [1, 1]} : vector<8x128xf32> to vector<8x32xf32>
    %45 = arith.negf %44 : vector<8x32xf32>
    %46 = math.exp %45 : vector<8x32xf32>
    %cst_15 = arith.constant 1.000000e+00 : f32
    %47 = vector.broadcast %cst_15 : f32 to vector<8x32xf32>
    %48 = arith.addf %47, %46 : vector<8x32xf32>
    %49 = arith.divf %47, %48 : vector<8x32xf32>
    %50 = vector.extract_strided_slice %43 {offsets = [0, 32], sizes = [8, 32], strides = [1, 1]} : vector<8x128xf32> to vector<8x32xf32>
    %51 = arith.negf %50 : vector<8x32xf32>
    %52 = math.exp %51 : vector<8x32xf32>
    %cst_16 = arith.constant 1.000000e+00 : f32
    %53 = vector.broadcast %cst_16 : f32 to vector<8x32xf32>
    %54 = arith.addf %53, %52 : vector<8x32xf32>
    %55 = arith.divf %53, %54 : vector<8x32xf32>
    %56 = vector.extract_strided_slice %43 {offsets = [0, 64], sizes = [8, 32], strides = [1, 1]} : vector<8x128xf32> to vector<8x32xf32>
    %57 = arith.negf %56 : vector<8x32xf32>
    %58 = math.exp %57 : vector<8x32xf32>
    %cst_17 = arith.constant 1.000000e+00 : f32
    %59 = vector.broadcast %cst_17 : f32 to vector<8x32xf32>
    %60 = arith.addf %59, %58 : vector<8x32xf32>
    %61 = arith.divf %59, %60 : vector<8x32xf32>
    %62 = vector.extract_strided_slice %43 {offsets = [0, 96], sizes = [8, 32], strides = [1, 1]} : vector<8x128xf32> to vector<8x32xf32>
    %63 = math.tanh %62 : vector<8x32xf32>
    %64 = arith.mulf %55, %37 : vector<8x32xf32>
    %65 = arith.mulf %49, %63 : vector<8x32xf32>
    %66 = arith.addf %64, %65 : vector<8x32xf32>
    %67 = math.tanh %66 : vector<8x32xf32>
    %68 = arith.mulf %61, %67 : vector<8x32xf32>
    %69 = vector.extract_strided_slice %7 {offsets = [0, 2, 0], sizes = [8, 1, 128], strides = [1, 1, 1]} : vector<8x8x128xf32> to vector<8x1x128xf32>
    %70 = vector.shape_cast %69 : vector<8x1x128xf32> to vector<8x128xf32>
    %cst_18 = arith.constant dense<0.000000e+00> : vector<8x128xf32>
    %71 = tpu.matmul %68, %8, %cst_18 {dimension_numbers = #tpu.dot_dimension_numbers<[1], [0], [0], [1], [0, 0, 1, 1], [], []>} : vector<8x32xf32>, vector<32x128xf32>, vector<8x128xf32> -> vector<8x128xf32>
    %72 = arith.addf %70, %71 : vector<8x128xf32>
    %73 = vector.extract_strided_slice %72 {offsets = [0, 0], sizes = [8, 32], strides = [1, 1]} : vector<8x128xf32> to vector<8x32xf32>
    %74 = arith.negf %73 : vector<8x32xf32>
    %75 = math.exp %74 : vector<8x32xf32>
    %cst_19 = arith.constant 1.000000e+00 : f32
    %76 = vector.broadcast %cst_19 : f32 to vector<8x32xf32>
    %77 = arith.addf %76, %75 : vector<8x32xf32>
    %78 = arith.divf %76, %77 : vector<8x32xf32>
    %79 = vector.extract_strided_slice %72 {offsets = [0, 32], sizes = [8, 32], strides = [1, 1]} : vector<8x128xf32> to vector<8x32xf32>
    %80 = arith.negf %79 : vector<8x32xf32>
    %81 = math.exp %80 : vector<8x32xf32>
    %cst_20 = arith.constant 1.000000e+00 : f32
    %82 = vector.broadcast %cst_20 : f32 to vector<8x32xf32>
    %83 = arith.addf %82, %81 : vector<8x32xf32>
    %84 = arith.divf %82, %83 : vector<8x32xf32>
    %85 = vector.extract_strided_slice %72 {offsets = [0, 64], sizes = [8, 32], strides = [1, 1]} : vector<8x128xf32> to vector<8x32xf32>
    %86 = arith.negf %85 : vector<8x32xf32>
    %87 = math.exp %86 : vector<8x32xf32>
    %cst_21 = arith.constant 1.000000e+00 : f32
    %88 = vector.broadcast %cst_21 : f32 to vector<8x32xf32>
    %89 = arith.addf %88, %87 : vector<8x32xf32>
    %90 = arith.divf %88, %89 : vector<8x32xf32>
    %91 = vector.extract_strided_slice %72 {offsets = [0, 96], sizes = [8, 32], strides = [1, 1]} : vector<8x128xf32> to vector<8x32xf32>
    %92 = math.tanh %91 : vector<8x32xf32>
    %93 = arith.mulf %84, %66 : vector<8x32xf32>
    %94 = arith.mulf %78, %92 : vector<8x32xf32>
    %95 = arith.addf %93, %94 : vector<8x32xf32>
    %96 = math.tanh %95 : vector<8x32xf32>
    %97 = arith.mulf %90, %96 : vector<8x32xf32>
    %98 = vector.extract_strided_slice %7 {offsets = [0, 3, 0], sizes = [8, 1, 128], strides = [1, 1, 1]} : vector<8x8x128xf32> to vector<8x1x128xf32>
    %99 = vector.shape_cast %98 : vector<8x1x128xf32> to vector<8x128xf32>
    %cst_22 = arith.constant dense<0.000000e+00> : vector<8x128xf32>
    %100 = tpu.matmul %97, %8, %cst_22 {dimension_numbers = #tpu.dot_dimension_numbers<[1], [0], [0], [1], [0, 0, 1, 1], [], []>} : vector<8x32xf32>, vector<32x128xf32>, vector<8x128xf32> -> vector<8x128xf32>
    %101 = arith.addf %99, %100 : vector<8x128xf32>
    %102 = vector.extract_strided_slice %101 {offsets = [0, 0], sizes = [8, 32], strides = [1, 1]} : vector<8x128xf32> to vector<8x32xf32>
    %103 = arith.negf %102 : vector<8x32xf32>
    %104 = math.exp %103 : vector<8x32xf32>
    %cst_23 = arith.constant 1.000000e+00 : f32
    %105 = vector.broadcast %cst_23 : f32 to vector<8x32xf32>
    %106 = arith.addf %105, %104 : vector<8x32xf32>
    %107 = arith.divf %105, %106 : vector<8x32xf32>
    %108 = vector.extract_strided_slice %101 {offsets = [0, 32], sizes = [8, 32], strides = [1, 1]} : vector<8x128xf32> to vector<8x32xf32>
    %109 = arith.negf %108 : vector<8x32xf32>
    %110 = math.exp %109 : vector<8x32xf32>
    %cst_24 = arith.constant 1.000000e+00 : f32
    %111 = vector.broadcast %cst_24 : f32 to vector<8x32xf32>
    %112 = arith.addf %111, %110 : vector<8x32xf32>
    %113 = arith.divf %111, %112 : vector<8x32xf32>
    %114 = vector.extract_strided_slice %101 {offsets = [0, 64], sizes = [8, 32], strides = [1, 1]} : vector<8x128xf32> to vector<8x32xf32>
    %115 = arith.negf %114 : vector<8x32xf32>
    %116 = math.exp %115 : vector<8x32xf32>
    %cst_25 = arith.constant 1.000000e+00 : f32
    %117 = vector.broadcast %cst_25 : f32 to vector<8x32xf32>
    %118 = arith.addf %117, %116 : vector<8x32xf32>
    %119 = arith.divf %117, %118 : vector<8x32xf32>
    %120 = vector.extract_strided_slice %101 {offsets = [0, 96], sizes = [8, 32], strides = [1, 1]} : vector<8x128xf32> to vector<8x32xf32>
    %121 = math.tanh %120 : vector<8x32xf32>
    %122 = arith.mulf %113, %95 : vector<8x32xf32>
    %123 = arith.mulf %107, %121 : vector<8x32xf32>
    %124 = arith.addf %122, %123 : vector<8x32xf32>
    %125 = math.tanh %124 : vector<8x32xf32>
    %126 = arith.mulf %119, %125 : vector<8x32xf32>
    %127 = vector.extract_strided_slice %7 {offsets = [0, 4, 0], sizes = [8, 1, 128], strides = [1, 1, 1]} : vector<8x8x128xf32> to vector<8x1x128xf32>
    %128 = vector.shape_cast %127 : vector<8x1x128xf32> to vector<8x128xf32>
    %cst_26 = arith.constant dense<0.000000e+00> : vector<8x128xf32>
    %129 = tpu.matmul %126, %8, %cst_26 {dimension_numbers = #tpu.dot_dimension_numbers<[1], [0], [0], [1], [0, 0, 1, 1], [], []>} : vector<8x32xf32>, vector<32x128xf32>, vector<8x128xf32> -> vector<8x128xf32>
    %130 = arith.addf %128, %129 : vector<8x128xf32>
    %131 = vector.extract_strided_slice %130 {offsets = [0, 0], sizes = [8, 32], strides = [1, 1]} : vector<8x128xf32> to vector<8x32xf32>
    %132 = arith.negf %131 : vector<8x32xf32>
    %133 = math.exp %132 : vector<8x32xf32>
    %cst_27 = arith.constant 1.000000e+00 : f32
    %134 = vector.broadcast %cst_27 : f32 to vector<8x32xf32>
    %135 = arith.addf %134, %133 : vector<8x32xf32>
    %136 = arith.divf %134, %135 : vector<8x32xf32>
    %137 = vector.extract_strided_slice %130 {offsets = [0, 32], sizes = [8, 32], strides = [1, 1]} : vector<8x128xf32> to vector<8x32xf32>
    %138 = arith.negf %137 : vector<8x32xf32>
    %139 = math.exp %138 : vector<8x32xf32>
    %cst_28 = arith.constant 1.000000e+00 : f32
    %140 = vector.broadcast %cst_28 : f32 to vector<8x32xf32>
    %141 = arith.addf %140, %139 : vector<8x32xf32>
    %142 = arith.divf %140, %141 : vector<8x32xf32>
    %143 = vector.extract_strided_slice %130 {offsets = [0, 64], sizes = [8, 32], strides = [1, 1]} : vector<8x128xf32> to vector<8x32xf32>
    %144 = arith.negf %143 : vector<8x32xf32>
    %145 = math.exp %144 : vector<8x32xf32>
    %cst_29 = arith.constant 1.000000e+00 : f32
    %146 = vector.broadcast %cst_29 : f32 to vector<8x32xf32>
    %147 = arith.addf %146, %145 : vector<8x32xf32>
    %148 = arith.divf %146, %147 : vector<8x32xf32>
    %149 = vector.extract_strided_slice %130 {offsets = [0, 96], sizes = [8, 32], strides = [1, 1]} : vector<8x128xf32> to vector<8x32xf32>
    %150 = math.tanh %149 : vector<8x32xf32>
    %151 = arith.mulf %142, %124 : vector<8x32xf32>
    %152 = arith.mulf %136, %150 : vector<8x32xf32>
    %153 = arith.addf %151, %152 : vector<8x32xf32>
    %154 = math.tanh %153 : vector<8x32xf32>
    %155 = arith.mulf %148, %154 : vector<8x32xf32>
    %156 = vector.extract_strided_slice %7 {offsets = [0, 5, 0], sizes = [8, 1, 128], strides = [1, 1, 1]} : vector<8x8x128xf32> to vector<8x1x128xf32>
    %157 = vector.shape_cast %156 : vector<8x1x128xf32> to vector<8x128xf32>
    %cst_30 = arith.constant dense<0.000000e+00> : vector<8x128xf32>
    %158 = tpu.matmul %155, %8, %cst_30 {dimension_numbers = #tpu.dot_dimension_numbers<[1], [0], [0], [1], [0, 0, 1, 1], [], []>} : vector<8x32xf32>, vector<32x128xf32>, vector<8x128xf32> -> vector<8x128xf32>
    %159 = arith.addf %157, %158 : vector<8x128xf32>
    %160 = vector.extract_strided_slice %159 {offsets = [0, 0], sizes = [8, 32], strides = [1, 1]} : vector<8x128xf32> to vector<8x32xf32>
    %161 = arith.negf %160 : vector<8x32xf32>
    %162 = math.exp %161 : vector<8x32xf32>
    %cst_31 = arith.constant 1.000000e+00 : f32
    %163 = vector.broadcast %cst_31 : f32 to vector<8x32xf32>
    %164 = arith.addf %163, %162 : vector<8x32xf32>
    %165 = arith.divf %163, %164 : vector<8x32xf32>
    %166 = vector.extract_strided_slice %159 {offsets = [0, 32], sizes = [8, 32], strides = [1, 1]} : vector<8x128xf32> to vector<8x32xf32>
    %167 = arith.negf %166 : vector<8x32xf32>
    %168 = math.exp %167 : vector<8x32xf32>
    %cst_32 = arith.constant 1.000000e+00 : f32
    %169 = vector.broadcast %cst_32 : f32 to vector<8x32xf32>
    %170 = arith.addf %169, %168 : vector<8x32xf32>
    %171 = arith.divf %169, %170 : vector<8x32xf32>
    %172 = vector.extract_strided_slice %159 {offsets = [0, 64], sizes = [8, 32], strides = [1, 1]} : vector<8x128xf32> to vector<8x32xf32>
    %173 = arith.negf %172 : vector<8x32xf32>
    %174 = math.exp %173 : vector<8x32xf32>
    %cst_33 = arith.constant 1.000000e+00 : f32
    %175 = vector.broadcast %cst_33 : f32 to vector<8x32xf32>
    %176 = arith.addf %175, %174 : vector<8x32xf32>
    %177 = arith.divf %175, %176 : vector<8x32xf32>
    %178 = vector.extract_strided_slice %159 {offsets = [0, 96], sizes = [8, 32], strides = [1, 1]} : vector<8x128xf32> to vector<8x32xf32>
    %179 = math.tanh %178 : vector<8x32xf32>
    %180 = arith.mulf %171, %153 : vector<8x32xf32>
    %181 = arith.mulf %165, %179 : vector<8x32xf32>
    %182 = arith.addf %180, %181 : vector<8x32xf32>
    %183 = math.tanh %182 : vector<8x32xf32>
    %184 = arith.mulf %177, %183 : vector<8x32xf32>
    %185 = vector.extract_strided_slice %7 {offsets = [0, 6, 0], sizes = [8, 1, 128], strides = [1, 1, 1]} : vector<8x8x128xf32> to vector<8x1x128xf32>
    %186 = vector.shape_cast %185 : vector<8x1x128xf32> to vector<8x128xf32>
    %cst_34 = arith.constant dense<0.000000e+00> : vector<8x128xf32>
    %187 = tpu.matmul %184, %8, %cst_34 {dimension_numbers = #tpu.dot_dimension_numbers<[1], [0], [0], [1], [0, 0, 1, 1], [], []>} : vector<8x32xf32>, vector<32x128xf32>, vector<8x128xf32> -> vector<8x128xf32>
    %188 = arith.addf %186, %187 : vector<8x128xf32>
    %189 = vector.extract_strided_slice %188 {offsets = [0, 0], sizes = [8, 32], strides = [1, 1]} : vector<8x128xf32> to vector<8x32xf32>
    %190 = arith.negf %189 : vector<8x32xf32>
    %191 = math.exp %190 : vector<8x32xf32>
    %cst_35 = arith.constant 1.000000e+00 : f32
    %192 = vector.broadcast %cst_35 : f32 to vector<8x32xf32>
    %193 = arith.addf %192, %191 : vector<8x32xf32>
    %194 = arith.divf %192, %193 : vector<8x32xf32>
    %195 = vector.extract_strided_slice %188 {offsets = [0, 32], sizes = [8, 32], strides = [1, 1]} : vector<8x128xf32> to vector<8x32xf32>
    %196 = arith.negf %195 : vector<8x32xf32>
    %197 = math.exp %196 : vector<8x32xf32>
    %cst_36 = arith.constant 1.000000e+00 : f32
    %198 = vector.broadcast %cst_36 : f32 to vector<8x32xf32>
    %199 = arith.addf %198, %197 : vector<8x32xf32>
    %200 = arith.divf %198, %199 : vector<8x32xf32>
    %201 = vector.extract_strided_slice %188 {offsets = [0, 64], sizes = [8, 32], strides = [1, 1]} : vector<8x128xf32> to vector<8x32xf32>
    %202 = arith.negf %201 : vector<8x32xf32>
    %203 = math.exp %202 : vector<8x32xf32>
    %cst_37 = arith.constant 1.000000e+00 : f32
    %204 = vector.broadcast %cst_37 : f32 to vector<8x32xf32>
    %205 = arith.addf %204, %203 : vector<8x32xf32>
    %206 = arith.divf %204, %205 : vector<8x32xf32>
    %207 = vector.extract_strided_slice %188 {offsets = [0, 96], sizes = [8, 32], strides = [1, 1]} : vector<8x128xf32> to vector<8x32xf32>
    %208 = math.tanh %207 : vector<8x32xf32>
    %209 = arith.mulf %200, %182 : vector<8x32xf32>
    %210 = arith.mulf %194, %208 : vector<8x32xf32>
    %211 = arith.addf %209, %210 : vector<8x32xf32>
    %212 = math.tanh %211 : vector<8x32xf32>
    %213 = arith.mulf %206, %212 : vector<8x32xf32>
    %214 = vector.extract_strided_slice %7 {offsets = [0, 7, 0], sizes = [8, 1, 128], strides = [1, 1, 1]} : vector<8x8x128xf32> to vector<8x1x128xf32>
    %215 = vector.shape_cast %214 : vector<8x1x128xf32> to vector<8x128xf32>
    %cst_38 = arith.constant dense<0.000000e+00> : vector<8x128xf32>
    %216 = tpu.matmul %213, %8, %cst_38 {dimension_numbers = #tpu.dot_dimension_numbers<[1], [0], [0], [1], [0, 0, 1, 1], [], []>} : vector<8x32xf32>, vector<32x128xf32>, vector<8x128xf32> -> vector<8x128xf32>
    %217 = arith.addf %215, %216 : vector<8x128xf32>
    %218 = vector.extract_strided_slice %217 {offsets = [0, 0], sizes = [8, 32], strides = [1, 1]} : vector<8x128xf32> to vector<8x32xf32>
    %219 = arith.negf %218 : vector<8x32xf32>
    %220 = math.exp %219 : vector<8x32xf32>
    %cst_39 = arith.constant 1.000000e+00 : f32
    %221 = vector.broadcast %cst_39 : f32 to vector<8x32xf32>
    %222 = arith.addf %221, %220 : vector<8x32xf32>
    %223 = arith.divf %221, %222 : vector<8x32xf32>
    %224 = vector.extract_strided_slice %217 {offsets = [0, 32], sizes = [8, 32], strides = [1, 1]} : vector<8x128xf32> to vector<8x32xf32>
    %225 = arith.negf %224 : vector<8x32xf32>
    %226 = math.exp %225 : vector<8x32xf32>
    %cst_40 = arith.constant 1.000000e+00 : f32
    %227 = vector.broadcast %cst_40 : f32 to vector<8x32xf32>
    %228 = arith.addf %227, %226 : vector<8x32xf32>
    %229 = arith.divf %227, %228 : vector<8x32xf32>
    %230 = vector.extract_strided_slice %217 {offsets = [0, 64], sizes = [8, 32], strides = [1, 1]} : vector<8x128xf32> to vector<8x32xf32>
    %231 = arith.negf %230 : vector<8x32xf32>
    %232 = math.exp %231 : vector<8x32xf32>
    %cst_41 = arith.constant 1.000000e+00 : f32
    %233 = vector.broadcast %cst_41 : f32 to vector<8x32xf32>
    %234 = arith.addf %233, %232 : vector<8x32xf32>
    %235 = arith.divf %233, %234 : vector<8x32xf32>
    %236 = vector.extract_strided_slice %217 {offsets = [0, 96], sizes = [8, 32], strides = [1, 1]} : vector<8x128xf32> to vector<8x32xf32>
    %237 = math.tanh %236 : vector<8x32xf32>
    %238 = arith.mulf %229, %211 : vector<8x32xf32>
    %239 = arith.mulf %223, %237 : vector<8x32xf32>
    %240 = arith.addf %238, %239 : vector<8x32xf32>
    %241 = math.tanh %240 : vector<8x32xf32>
    %242 = arith.mulf %235, %241 : vector<8x32xf32>
    %c0_42 = arith.constant 0 : index
    %c0_43 = arith.constant 0 : index
    %243 = vector.load %arg4[%c0_42, %c0_43] : memref<1x32xf32, #tpu.memory_space<vmem>>, vector<1x32xf32>
    %244 = vector.broadcast %243 : vector<1x32xf32> to vector<8x32xf32>
    %245 = arith.mulf %242, %244 : vector<8x32xf32>
    %c0_44 = arith.constant 0 : index
    %c0_45 = arith.constant 0 : index
    %246 = vector.load %arg5[%c0_44, %c0_45] : memref<1x32xf32, #tpu.memory_space<vmem>>, vector<1x32xf32>
    %247 = vector.broadcast %246 : vector<1x32xf32> to vector<8x32xf32>
    %248 = arith.mulf %240, %247 : vector<8x32xf32>
    %249 = arith.addf %245, %248 : vector<8x32xf32>
    %cst_46 = arith.constant dense<0.000000e+00> : vector<8xf32>
    %250 = vector.multi_reduction <add>, %249, %cst_46 [1] : vector<8x32xf32> to vector<8xf32>
    %251 = vector.shape_cast %250 : vector<8xf32> to vector<8x1xf32>
    %c0_47 = arith.constant 0 : index
    %c0_48 = arith.constant 0 : index
    %252 = vector.load %arg6[%c0_47, %c0_48] : memref<1x1xf32, #tpu.memory_space<vmem>>, vector<1x1xf32>
    %253 = vector.broadcast %252 : vector<1x1xf32> to vector<8x1xf32>
    %254 = arith.addf %251, %253 : vector<8x1xf32>
    %255 = arith.negf %254 : vector<8x1xf32>
    %256 = math.exp %255 : vector<8x1xf32>
    %cst_49 = arith.constant 1.000000e+00 : f32
    %257 = vector.broadcast %cst_49 : f32 to vector<8x1xf32>
    %258 = arith.addf %257, %256 : vector<8x1xf32>
    %259 = arith.divf %257, %258 : vector<8x1xf32>
    %c0_50 = arith.constant 0 : index
    %c0_51 = arith.constant 0 : index
    %260 = vector.load %arg7[%c0_50, %c0_51] : memref<8x1xf32, #tpu.memory_space<vmem>>, vector<8x1xf32>
    tpu.vector_store %arg7[%c0_50, %c0_51], %259 {strides = array<i32>} : memref<8x1xf32, #tpu.memory_space<vmem>>, vector<8x1xf32>,
    %c0_52 = arith.constant 0 : index
    %c0_53 = arith.constant 0 : index
    %261 = vector.load %arg8[%c0_52, %c0_53] : memref<8x32xf32, #tpu.memory_space<vmem>>, vector<8x32xf32>
    tpu.vector_store %arg8[%c0_52, %c0_53], %242 {strides = array<i32>} : memref<8x32xf32, #tpu.memory_space<vmem>>, vector<8x32xf32>,
    return
  }
}

</mosaic_0001>

<llo_original>
// kernel: tpu_custom_call.1
$region0: #{tpu_custom_call.1}
  #allocation0 [shape = 'u32[]', space=smem, size = 0x4, offset = 0x4, fixed_abs, tag = 'smem constant byte address 0x4 - core index']
  #allocation1 [shape = 'u32[144,128]{1,0:T(1,128)}', space=vmem, size = 0x12000, scoped, tag = 'internal scratch']
  #allocation2 [shape = 'f32[1,1]{1,0:T(1,128)S(1)}', space=vmem, size = 0x200, scoped, tag = 'scoped memory for tpu_custom_call.1']
  %s0 = inlined_call_operand.hbm [shape: f32[8,8,16], index: 0, kind: input, shape index: {}]
  %s1 = inlined_call_operand.hbm [shape: f32[16,128], index: 1, kind: input, shape index: {}]
  %s2 = inlined_call_operand.hbm [shape: f32[32,128], index: 2, kind: input, shape index: {}]
  %s3 = inlined_call_operand.vmem [shape: f32[1,128], index: 3, kind: input, shape index: {}]
  %s4 = inlined_call_operand.vmem [shape: f32[1,32], index: 4, kind: input, shape index: {}]
  %s5 = inlined_call_operand.vmem [shape: f32[1,32], index: 5, kind: input, shape index: {}]
  %s6 = inlined_call_operand.<no memory space> [shape: f32[1,1], index: 6, kind: input, shape index: {}]
  %s7 = inlined_call_operand.vmem [shape: f32[8,1], index: 7, kind: output, shape index: {0}]
  %s8 = inlined_call_operand.hbm [shape: f32[8,32], index: 8, kind: output, shape index: {1}]
  %9 = xla_tuple %s7, %s8
  %s10 = sld [smem:[#allocation0]]
  $region58: #{tpu_custom_call.1} parent=0
    _
  %s12 = ssub.s32 1, %s10
  %s13 = scalar_select 0, %s12, %s10
  %v14 = vstv %s6
  %15 = vst [vmem:[#allocation2] sm:$0x1] %v14
  $region1: #{tpu_custom_call.1} parent=0
    #allocation3 [shape = 'u8[32768]{0}', space=vmem, size = 0x8000, scoped, tag = 'input window, operand 0, single buffered']
    #allocation4 [shape = 's32[1]{0}', space=sflag, size = 0x4, scoped, tag = 'scoped memory for tpu_custom_call.1']
    #allocation5 [shape = 's32[1]{0}', space=sflag, size = 0x4, scoped, tag = 'scoped memory for tpu_custom_call.1']
    #allocation6 [shape = 'u8[8192]{0}', space=vmem, size = 0x2000, scoped, tag = 'input window, operand 1, single buffered']
    #allocation7 [shape = 's32[1]{0}', space=sflag, size = 0x4, scoped, tag = 'scoped memory for tpu_custom_call.1']
    #allocation8 [shape = 'u8[16384]{0}', space=vmem, size = 0x4000, scoped, tag = 'input window, operand 2, single buffered']
    #allocation9 [shape = 'u8[4096]{0}', space=vmem, size = 0x1000, scoped, tag = 'output window, operand 1, single buffered']
    %16 = vsyncpa [#allocation4], 0
    %17 = vsyncpa [#allocation7], 0
    %18 = vsyncpa [#allocation5], 0
    // Predicated region
    $region2: #{tpu_custom_call.1} parent=1 // pred_check
      _
    $region3: #{tpu_custom_call.1} parent=1 // pred_check_branch
      %20 = sbr.rel (0) target = $region5
    $region4: #{tpu_custom_call.1} parent=1 // pred_region
      %s22 = ssub.s32 1024, 1024
      %23 = vsyncadd [#allocation4], %s22
      %s24 = sshll.u32 [#allocation3], 4
      %s25 = int_to_ptr.vmem [resolvable:$true] %s24
      %30 = dma.hbm_to_vmem [thread:$0]  %s0, 1024, %s25, [#allocation4], 128, 128, 8
    $region5: #{tpu_custom_call.1} parent=1 // pred_fallthru
      _
    // Predicated region
    $region6: #{tpu_custom_call.1} parent=1 // pred_check
      _
    $region7: #{tpu_custom_call.1} parent=1 // pred_check_branch
      %32 = sbr.rel (0) target = $region9
    $region8: #{tpu_custom_call.1} parent=1 // pred_region
      %s34 = ssub.s32 256, 256
      %35 = vsyncadd [#allocation7], %s34
      %s36 = sshll.u32 [#allocation6], 4
      %s37 = int_to_ptr.vmem [resolvable:$true] %s36
      %42 = dma.hbm_to_vmem [thread:$0]  %s1, 256, %s37, [#allocation7], 128, 128, 8
    $region9: #{tpu_custom_call.1} parent=1 // pred_fallthru
      _
    // Predicated region
    $region10: #{tpu_custom_call.1} parent=1 // pred_check
      _
    $region11: #{tpu_custom_call.1} parent=1 // pred_check_branch
      %44 = sbr.rel (0) target = $region13
    $region12: #{tpu_custom_call.1} parent=1 // pred_region
      %s46 = ssub.s32 512, 512
      %47 = vsyncadd [#allocation7], %s46
      %s48 = sshll.u32 [#allocation8], 4
      %s49 = int_to_ptr.vmem [resolvable:$true] %s48
      %54 = dma.hbm_to_vmem [thread:$0]  %s2, 512, %s49, [#allocation7], 128, 128, 8
    $region13: #{tpu_custom_call.1} parent=1 // pred_fallthru
      _
    // Predicated region
    $region14: #{tpu_custom_call.1} parent=1 // pred_check
      _
    $region15: #{tpu_custom_call.1} parent=1 // pred_check_branch
      %56 = sbr.rel (0) target = $region17
    $region16: #{tpu_custom_call.1} parent=1 // pred_region
      _
    $region17: #{tpu_custom_call.1} parent=1 // pred_fallthru
      _
    // Predicated region
    $region18: #{tpu_custom_call.1} parent=1 // pred_check
      _
    $region19: #{tpu_custom_call.1} parent=1 // pred_check_branch
      %58 = sbr.rel (0) target = $region21
    $region20: #{tpu_custom_call.1} parent=1 // pred_region
      _
    $region21: #{tpu_custom_call.1} parent=1 // pred_fallthru
      _
    // Predicated region
    $region22: #{tpu_custom_call.1} parent=1 // pred_check
      _
    $region23: #{tpu_custom_call.1} parent=1 // pred_check_branch
      %60 = sbr.rel (0) target = $region25
    $region24: #{tpu_custom_call.1} parent=1 // pred_region
      _
    $region25: #{tpu_custom_call.1} parent=1 // pred_fallthru
      _
    // Predicated region
    $region26: #{tpu_custom_call.1} parent=1 // pred_check
      _
    $region27: #{tpu_custom_call.1} parent=1 // pred_check_branch
      %62 = sbr.rel (0) target = $region29
    $region28: #{tpu_custom_call.1} parent=1 // pred_region
      _
    $region29: #{tpu_custom_call.1} parent=1 // pred_fallthru
      _
    // Predicated region
    $region30: #{tpu_custom_call.1} parent=1 // pred_check
      _
    $region31: #{tpu_custom_call.1} parent=1 // pred_check_branch
      %64 = sbr.rel (0) target = $region33
    $region32: #{tpu_custom_call.1} parent=1 // pred_region
      %65 = dma.done [#allocation4], 1024
    $region33: #{tpu_custom_call.1} parent=1 // pred_fallthru
      _
    // Predicated region
    $region34: #{tpu_custom_call.1} parent=1 // pred_check
      _
    $region35: #{tpu_custom_call.1} parent=1 // pred_check_branch
      %67 = sbr.rel (0) target = $region37
    $region36: #{tpu_custom_call.1} parent=1 // pred_region
      %68 = dma.done [#allocation7], 256
    $region37: #{tpu_custom_call.1} parent=1 // pred_fallthru
      _
    // Predicated region
    $region38: #{tpu_custom_call.1} parent=1 // pred_check
      _
    $region39: #{tpu_custom_call.1} parent=1 // pred_check_branch
      %70 = sbr.rel (0) target = $region41
    $region40: #{tpu_custom_call.1} parent=1 // pred_region
      %71 = dma.done [#allocation7], 512
    $region41: #{tpu_custom_call.1} parent=1 // pred_fallthru
      _
    %v72 = vld [vmem:[#allocation3] sm:$0xff]
    %v73 = vld [vmem:[#allocation3 + $0x8] sm:$0xff]
    %v74 = vld [vmem:[#allocation3 + $0x10] sm:$0xff]
    %v75 = vld [vmem:[#allocation3 + $0x18] sm:$0xff]
    %v76 = vld [vmem:[#allocation3 + $0x20] sm:$0xff]
    %v77 = vld [vmem:[#allocation3 + $0x28] sm:$0xff]
    %v78 = vld [vmem:[#allocation3 + $0x30] sm:$0xff]
    %v79 = vld [vmem:[#allocation3 + $0x38] sm:$0xff]
    %v80 = vld [vmem:[#allocation6] sm:$0xff]
    %v81 = vld [vmem:[#allocation6 + $0x8] sm:$0xff]
    %v82 = vld [vmem:[%s3] sm:$0x1]
    %v84 = vlaneseq
    %v85 = vshrl.u32 %v84, 7
    %v86 = vsub.s32 0, %v85
    %v87 = vrot.slane %v82, %v86
    %vm89 = vcmask 130048
    %v91 = vsel %vm89, %v72, 0
    %v94 = vsel %vm89, %v73, 0
    %v97 = vsel %vm89, %v74, 0
    %v100 = vsel %vm89, %v75, 0
    %v103 = vsel %vm89, %v76, 0
    %v106 = vsel %vm89, %v77, 0
    %v109 = vsel %vm89, %v78, 0
    %v112 = vsel %vm89, %v79, 0
    %114 = vmatprep.subr.mxu0 0.0
    %115 = vmatpush1.msra.mxu0 %v80
    %116 = vmatprep.subr.mxu0 0.0
    %117 = vmatpush1.msra.mxu0 %v81
    %118 = vmatprep.subr.mxu0 0.0
    %119 = vmatpush1.msra.mxu0 0.0
    %120 = vmatprep.subr.mxu0 0.0
    %121 = vmatpush1.msra.mxu0 0.0
    %122 = vmatprep.subr.mxu0 0.0
    %123 = vmatpush1.msra.mxu0 0.0
    %124 = vmatprep.subr.mxu0 0.0
    %125 = vmatpush1.msra.mxu0 0.0
    %126 = vmatprep.subr.mxu0 0.0
    %127 = vmatpush1.msra.mxu0 0.0
    %128 = vmatprep.subr.mxu0 0.0
    %129 = vmatpush1.msra.mxu0 0.0
    %130 = vmatprep.subr.mxu0 0.0
    %131 = vmatpush1.msra.mxu0 0.0
    %132 = vmatprep.subr.mxu0 0.0
    %133 = vmatpush1.msra.mxu0 0.0
    %134 = vmatprep.subr.mxu0 0.0
    %135 = vmatpush1.msra.mxu0 0.0
    %136 = vmatprep.subr.mxu0 0.0
    %137 = vmatpush1.msra.mxu0 0.0
    %138 = vmatprep.subr.mxu0 0.0
    %139 = vmatpush1.msra.mxu0 0.0
    %140 = vmatprep.subr.mxu0 0.0
    %141 = vmatpush1.msra.mxu0 0.0
    %142 = vmatprep.subr.mxu0 0.0
    %143 = vmatpush1.msra.mxu0 0.0
    %144 = vmatprep.subr.mxu0 0.0
    %145 = vmatpush1.msra.mxu0 0.0
    %146 = vmatprep.subr.mxu0 0.0
    %147 = vmatpush1.msra.mxu0 0.0
    %148 = vmatprep.subr.mxu0 0.0
    %149 = vmatpush1.msra.mxu0 0.0
    %150 = vmatprep.subr.mxu0 0.0
    %151 = vmatpush1.msra.mxu0 0.0
    %152 = vmatprep.subr.mxu0 0.0
    %153 = vmatpush1.msra.mxu0 0.0
    %154 = vmatprep.subr.mxu0 0.0
    %155 = vmatpush1.msra.mxu0 0.0
    %156 = vmatprep.subr.mxu0 0.0
    %157 = vmatpush1.msra.mxu0 0.0
    %158 = vmatprep.subr.mxu0 0.0
    %159 = vmatpush1.msra.mxu0 0.0
    %160 = vmatprep.subr.mxu0 0.0
    %161 = vmatpush1.msra.mxu0 0.0
    %162 = vmatprep.subr.mxu0 0.0
    %163 = vmatpush1.msra.mxu0 0.0
    %164 = vmatprep.subr.mxu0 0.0
    %165 = vmatpush1.msra.mxu0 0.0
    %166 = vmatprep.subr.mxu0 0.0
    %167 = vmatpush1.msra.mxu0 0.0
    %168 = vmatprep.subr.mxu0 0.0
    %169 = vmatpush1.msra.mxu0 0.0
    %170 = vmatprep.subr.mxu0 0.0
    %171 = vmatpush1.msra.mxu0 0.0
    %172 = vmatprep.subr.mxu0 0.0
    %173 = vmatpush1.msra.mxu0 0.0
    %174 = vmatprep.subr.mxu0 0.0
    %175 = vmatpush1.msra.mxu0 0.0
    %176 = vmatprep.subr.mxu0 0.0
    %177 = vmatpush1.msra.mxu0 0.0
    %178 = vmatprep.mubr.f32.mxu0 0.0
    %179 = vmatmul.mubr.f32.gmra.mrb[0].mxu0 %v91
    %v180 = vpop.f32.mrb[0].mxu0
    %v181 = vadd.f32 %v87, %v180
    %v182 = vpop.f32.mrb[0].mxu0
    %183 = vmatprep.mubr.f32.mxu0 0.0
    %184 = vmatmul.mubr.f32.gmra.mrb[0].mxu0 %v94
    %v185 = vpop.f32.mrb[0].mxu0
    %v186 = vadd.f32 %v87, %v185
    %v187 = vpop.f32.mrb[0].mxu0
    %188 = vmatprep.mubr.f32.mxu0 0.0
    %189 = vmatmul.mubr.f32.gmra.mrb[0].mxu0 %v97
    %v190 = vpop.f32.mrb[0].mxu0
    %v191 = vadd.f32 %v87, %v190
    %v192 = vpop.f32.mrb[0].mxu0
    %193 = vmatprep.mubr.f32.mxu0 0.0
    %194 = vmatmul.mubr.f32.gmra.mrb[0].mxu0 %v100
    %v195 = vpop.f32.mrb[0].mxu0
    %v196 = vadd.f32 %v87, %v195
    %v197 = vpop.f32.mrb[0].mxu0
    %198 = vmatprep.mubr.f32.mxu0 0.0
    %199 = vmatmul.mubr.f32.gmra.mrb[0].mxu0 %v103
    %v200 = vpop.f32.mrb[0].mxu0
    %v201 = vadd.f32 %v87, %v200
    %v202 = vpop.f32.mrb[0].mxu0
    %203 = vmatprep.mubr.f32.mxu0 0.0
    %204 = vmatmul.mubr.f32.gmra.mrb[0].mxu0 %v106
    %v205 = vpop.f32.mrb[0].mxu0
    %v206 = vadd.f32 %v87, %v205
    %v207 = vpop.f32.mrb[0].mxu0
    %208 = vmatprep.mubr.f32.mxu0 0.0
    %209 = vmatmul.mubr.f32.gmra.mrb[0].mxu0 %v109
    %v210 = vpop.f32.mrb[0].mxu0
    %v211 = vadd.f32 %v87, %v210
    %v212 = vpop.f32.mrb[0].mxu0
    %213 = vmatprep.mubr.f32.mxu0 0.0
    %214 = vmatmul.mubr.f32.gmra.mrb[0].mxu0 %v112
    %v215 = vpop.f32.mrb[0].mxu0
    %v216 = vadd.f32 %v87, %v215
    %v217 = vpop.f32.mrb[0].mxu0
    %218 = vdwg.mxu0
    %v219 = vld [vmem:[#allocation8] sm:$0xff]
    %v220 = vld [vmem:[#allocation8 + $0x8] sm:$0xff]
    %v221 = vld [vmem:[#allocation8 + $0x10] sm:$0xff]
    %v222 = vld [vmem:[#allocation8 + $0x18] sm:$0xff]
    %vm223 = vcmask 261120
    %v225 = vsel %vm223, 0.0, 0
    %227 = vmatprep.subr.mxu0 0.0
    %228 = vmatpush1.msra.mxu0 %v219
    %229 = vmatprep.subr.mxu0 0.0
    %230 = vmatpush1.msra.mxu0 %v220
    %231 = vmatprep.subr.mxu0 0.0
    %232 = vmatpush1.msra.mxu0 %v221
    %233 = vmatprep.subr.mxu0 0.0
    %234 = vmatpush1.msra.mxu0 %v222
    %235 = vmatprep.subr.mxu0 0.0
    %236 = vmatpush1.msra.mxu0 0.0
    %237 = vmatprep.subr.mxu0 0.0
    %238 = vmatpush1.msra.mxu0 0.0
    %239 = vmatprep.subr.mxu0 0.0
    %240 = vmatpush1.msra.mxu0 0.0
    %241 = vmatprep.subr.mxu0 0.0
    %242 = vmatpush1.msra.mxu0 0.0
    %243 = vmatprep.subr.mxu0 0.0
    %244 = vmatpush1.msra.mxu0 0.0
    %245 = vmatprep.subr.mxu0 0.0
    %246 = vmatpush1.msra.mxu0 0.0
    %247 = vmatprep.subr.mxu0 0.0
    %248 = vmatpush1.msra.mxu0 0.0
    %249 = vmatprep.subr.mxu0 0.0
    %250 = vmatpush1.msra.mxu0 0.0
    %251 = vmatprep.subr.mxu0 0.0
    %252 = vmatpush1.msra.mxu0 0.0
    %253 = vmatprep.subr.mxu0 0.0
    %254 = vmatpush1.msra.mxu0 0.0
    %255 = vmatprep.subr.mxu0 0.0
    %256 = vmatpush1.msra.mxu0 0.0
    %257 = vmatprep.subr.mxu0 0.0
    %258 = vmatpush1.msra.mxu0 0.0
    %259 = vmatprep.subr.mxu0 0.0
    %260 = vmatpush1.msra.mxu0 0.0
    %261 = vmatprep.subr.mxu0 0.0
    %262 = vmatpush1.msra.mxu0 0.0
    %263 = vmatprep.subr.mxu0 0.0
    %264 = vmatpush1.msra.mxu0 0.0
    %265 = vmatprep.subr.mxu0 0.0
    %266 = vmatpush1.msra.mxu0 0.0
    %267 = vmatprep.subr.mxu0 0.0
    %268 = vmatpush1.msra.mxu0 0.0
    %269 = vmatprep.subr.mxu0 0.0
    %270 = vmatpush1.msra.mxu0 0.0
    %271 = vmatprep.subr.mxu0 0.0
    %272 = vmatpush1.msra.mxu0 0.0
    %273 = vmatprep.subr.mxu0 0.0
    %274 = vmatpush1.msra.mxu0 0.0
    %275 = vmatprep.subr.mxu0 0.0
    %276 = vmatpush1.msra.mxu0 0.0
    %277 = vmatprep.subr.mxu0 0.0
    %278 = vmatpush1.msra.mxu0 0.0
    %279 = vmatprep.subr.mxu0 0.0
    %280 = vmatpush1.msra.mxu0 0.0
    %281 = vmatprep.subr.mxu0 0.0
    %282 = vmatpush1.msra.mxu0 0.0
    %283 = vmatprep.subr.mxu0 0.0
    %284 = vmatpush1.msra.mxu0 0.0
    %285 = vmatprep.subr.mxu0 0.0
    %286 = vmatpush1.msra.mxu0 0.0
    %287 = vmatprep.subr.mxu0 0.0
    %288 = vmatpush1.msra.mxu0 0.0
    %289 = vmatprep.subr.mxu0 0.0
    %290 = vmatpush1.msra.mxu0 0.0
    %291 = vmatprep.mubr.f32.mxu0 0.0
    %292 = vmatmul.mubr.f32.gmra.mrb[0].mxu0 %v225
    %v293 = vpop.f32.mrb[0].mxu0
    %v294 = vadd.f32 0.0, %v293
    %v295 = vpop.f32.mrb[0].mxu0
    %296 = vdwg.mxu0
    %v298 = vrot.slane %v294, 1
    %v299 = vrot.slane %v294, 2
    %v300 = vrot.slane %v294, 3
    %v301 = vrot.slane %v294, 4
    %v302 = vrot.slane %v294, 5
    %v303 = vrot.slane %v294, 6
    %v304 = vrot.slane %v294, 7
    %v313 = vadd.f32 %v181, %v294
    %v314 = vadd.f32 %v186, %v298
    %v315 = vadd.f32 %v191, %v299
    %v316 = vadd.f32 %v196, %v300
    %v317 = vadd.f32 %v201, %v301
    %v318 = vadd.f32 %v206, %v302
    %v319 = vadd.f32 %v211, %v303
    %v320 = vadd.f32 %v216, %v304
    %v321 = vxor.u32 %v313, 2147483648
    %v322 = vxor.u32 %v314, 2147483648
    %v323 = vxor.u32 %v315, 2147483648
    %v324 = vxor.u32 %v316, 2147483648
    %v325 = vxor.u32 %v317, 2147483648
    %v326 = vxor.u32 %v318, 2147483648
    %v327 = vxor.u32 %v319, 2147483648
    %v328 = vxor.u32 %v320, 2147483648
    %v329 = vmul.f32 %v321, 1.442695
    %v330 = vpow.pop %v329
    %v331 = vmul.f32 %v322, 1.442695
    %v332 = vpow.pop %v331
    %v333 = vmul.f32 %v323, 1.442695
    %v334 = vpow.pop %v333
    %v335 = vmul.f32 %v324, 1.442695
    %v336 = vpow.pop %v335
    %v337 = vmul.f32 %v325, 1.442695
    %v338 = vpow.pop %v337
    %v339 = vmul.f32 %v326, 1.442695
    %v340 = vpow.pop %v339
    %v341 = vmul.f32 %v327, 1.442695
    %v342 = vpow.pop %v341
    %v343 = vmul.f32 %v328, 1.442695
    %v344 = vpow.pop %v343
    %v345 = vadd.f32 %v330, 1.0
    %v346 = vadd.f32 %v332, 1.0
    %v347 = vadd.f32 %v334, 1.0
    %v348 = vadd.f32 %v336, 1.0
    %v349 = vadd.f32 %v338, 1.0
    %v350 = vadd.f32 %v340, 1.0
    %v351 = vadd.f32 %v342, 1.0
    %v352 = vadd.f32 %v344, 1.0
    %v353 = vrcp.pop %v345
    %v354 = vmul.f32 1.0, %v353
    %v355 = vrcp.pop %v346
    %v356 = vmul.f32 1.0, %v355
    %v357 = vrcp.pop %v347
    %v358 = vmul.f32 1.0, %v357
    %v359 = vrcp.pop %v348
    %v360 = vmul.f32 1.0, %v359
    %v361 = vrcp.pop %v349
    %v362 = vmul.f32 1.0, %v361
    %v363 = vrcp.pop %v350
    %v364 = vmul.f32 1.0, %v363
    %v365 = vrcp.pop %v351
    %v366 = vmul.f32 1.0, %v365
    %v367 = vrcp.pop %v352
    %v368 = vmul.f32 1.0, %v367
    %v369 = vtanh.pop %v313
    %v370 = vtanh.pop %v314
    %v371 = vtanh.pop %v315
    %v372 = vtanh.pop %v316
    %v373 = vtanh.pop %v317
    %v374 = vtanh.pop %v318
    %v375 = vtanh.pop %v319
    %v376 = vtanh.pop %v320
    %v377 = vmul.f32 %v354, 0.0
    %v378 = vmul.f32 %v356, 0.0
    %v379 = vmul.f32 %v358, 0.0
    %v380 = vmul.f32 %v360, 0.0
    %v381 = vmul.f32 %v362, 0.0
    %v382 = vmul.f32 %v364, 0.0
    %v383 = vmul.f32 %v366, 0.0
    %v384 = vmul.f32 %v368, 0.0
    %393 = vrot.lane.b32.xlu0 %v369, 32
    %v394 = vpop.permute.xlu0 %393
    %395 = vrot.lane.b32.xlu0 %v370, 32
    %v396 = vpop.permute.xlu0 %395
    %397 = vrot.lane.b32.xlu0 %v371, 32
    %v398 = vpop.permute.xlu0 %397
    %399 = vrot.lane.b32.xlu0 %v372, 32
    %v400 = vpop.permute.xlu0 %399
    %401 = vrot.lane.b32.xlu0 %v373, 32
    %v402 = vpop.permute.xlu0 %401
    %403 = vrot.lane.b32.xlu0 %v374, 32
    %v404 = vpop.permute.xlu0 %403
    %405 = vrot.lane.b32.xlu0 %v375, 32
    %v406 = vpop.permute.xlu0 %405
    %407 = vrot.lane.b32.xlu0 %v376, 32
    %v408 = vpop.permute.xlu0 %407
    %v417 = vmul.f32 %v354, %v394
    %v418 = vmul.f32 %v356, %v396
    %v419 = vmul.f32 %v358, %v398
    %v420 = vmul.f32 %v360, %v400
    %v421 = vmul.f32 %v362, %v402
    %v422 = vmul.f32 %v364, %v404
    %v423 = vmul.f32 %v366, %v406
    %v424 = vmul.f32 %v368, %v408
    %433 = vrot.lane.b32.xlu0 %v417, 32
    %v434 = vpop.permute.xlu0 %433
    %435 = vrot.lane.b32.xlu0 %v418, 32
    %v436 = vpop.permute.xlu0 %435
    %437 = vrot.lane.b32.xlu0 %v419, 32
    %v438 = vpop.permute.xlu0 %437
    %439 = vrot.lane.b32.xlu0 %v420, 32
    %v440 = vpop.permute.xlu0 %439
    %441 = vrot.lane.b32.xlu0 %v421, 32
    %v442 = vpop.permute.xlu0 %441
    %443 = vrot.lane.b32.xlu0 %v422, 32
    %v444 = vpop.permute.xlu0 %443
    %445 = vrot.lane.b32.xlu0 %v423, 32
    %v446 = vpop.permute.xlu0 %445
    %447 = vrot.lane.b32.xlu0 %v424, 32
    %v448 = vpop.permute.xlu0 %447
    %v457 = vadd.f32 %v377, %v434
    %v458 = vadd.f32 %v378, %v436
    %v459 = vadd.f32 %v379, %v438
    %v460 = vadd.f32 %v380, %v440
    %v461 = vadd.f32 %v381, %v442
    %v462 = vadd.f32 %v382, %v444
    %v463 = vadd.f32 %v383, %v446
    %v464 = vadd.f32 %v384, %v448
    %v465 = vtanh.pop %v457
    %v466 = vtanh.pop %v458
    %v467 = vtanh.pop %v459
    %v468 = vtanh.pop %v460
    %v469 = vtanh.pop %v461
    %v470 = vtanh.pop %v462
    %v471 = vtanh.pop %v463
    %v472 = vtanh.pop %v464
    %481 = vrot.lane.b32.xlu0 %v465, 32
    %v482 = vpop.permute.xlu0 %481
    %483 = vrot.lane.b32.xlu0 %v466, 32
    %v484 = vpop.permute.xlu0 %483
    %485 = vrot.lane.b32.xlu0 %v467, 32
    %v486 = vpop.permute.xlu0 %485
    %487 = vrot.lane.b32.xlu0 %v468, 32
    %v488 = vpop.permute.xlu0 %487
    %489 = vrot.lane.b32.xlu0 %v469, 32
    %v490 = vpop.permute.xlu0 %489
    %491 = vrot.lane.b32.xlu0 %v470, 32
    %v492 = vpop.permute.xlu0 %491
    %493 = vrot.lane.b32.xlu0 %v471, 32
    %v494 = vpop.permute.xlu0 %493
    %495 = vrot.lane.b32.xlu0 %v472, 32
    %v496 = vpop.permute.xlu0 %495
    %v505 = vmul.f32 %v354, %v482
    %v506 = vmul.f32 %v356, %v484
    %v507 = vmul.f32 %v358, %v486
    %v508 = vmul.f32 %v360, %v488
    %v509 = vmul.f32 %v362, %v490
    %v510 = vmul.f32 %v364, %v492
    %v511 = vmul.f32 %v366, %v494
    %v512 = vmul.f32 %v368, %v496
    %v521 = vrot.slane %v506, 7
    %vm522 = vcmask 1041409
    %v523 = vsel %vm522, %v521, %v505
    %v524 = vrot.slane %v507, 6
    %vm525 = vcmask 1042434
    %v526 = vsel %vm525, %v524, %v523
    %v527 = vrot.slane %v508, 5
    %vm528 = vcmask 1043459
    %v529 = vsel %vm528, %v527, %v526
    %v530 = vrot.slane %v509, 4
    %vm531 = vcmask 1044484
    %v532 = vsel %vm531, %v530, %v529
    %v533 = vrot.slane %v510, 3
    %vm534 = vcmask 1045509
    %v535 = vsel %vm534, %v533, %v532
    %v536 = vrot.slane %v511, 2
    %vm537 = vcmask 1046534
    %v538 = vsel %vm537, %v536, %v535
    %v539 = vrot.slane %v512, 1
    %vm540 = vcmask 1047559
    %v541 = vsel %vm540, %v539, %v538
    %542 = vrot.lane.b32.xlu0 %v541, 64
    %v543 = vpop.permute.xlu0 %542
    %v544 = vsel %vm223, %v543, 0
    %546 = vmatprep.subr.mxu0 0.0
    %547 = vmatpush1.msra.mxu0 %v219
    %548 = vmatprep.subr.mxu0 0.0
    %549 = vmatpush1.msra.mxu0 %v220
    %550 = vmatprep.subr.mxu0 0.0
    %551 = vmatpush1.msra.mxu0 %v221
    %552 = vmatprep.subr.mxu0 0.0
    %553 = vmatpush1.msra.mxu0 %v222
    %554 = vmatprep.subr.mxu0 0.0
    %555 = vmatpush1.msra.mxu0 0.0
    %556 = vmatprep.subr.mxu0 0.0
    %557 = vmatpush1.msra.mxu0 0.0
    %558 = vmatprep.subr.mxu0 0.0
    %559 = vmatpush1.msra.mxu0 0.0
    %560 = vmatprep.subr.mxu0 0.0
    %561 = vmatpush1.msra.mxu0 0.0
    %562 = vmatprep.subr.mxu0 0.0
    %563 = vmatpush1.msra.mxu0 0.0
    %564 = vmatprep.subr.mxu0 0.0
    %565 = vmatpush1.msra.mxu0 0.0
    %566 = vmatprep.subr.mxu0 0.0
    %567 = vmatpush1.msra.mxu0 0.0
    %568 = vmatprep.subr.mxu0 0.0
    %569 = vmatpush1.msra.mxu0 0.0
    %570 = vmatprep.subr.mxu0 0.0
    %571 = vmatpush1.msra.mxu0 0.0
    %572 = vmatprep.subr.mxu0 0.0
    %573 = vmatpush1.msra.mxu0 0.0
    %574 = vmatprep.subr.mxu0 0.0
    %575 = vmatpush1.msra.mxu0 0.0
    %576 = vmatprep.subr.mxu0 0.0
    %577 = vmatpush1.msra.mxu0 0.0
    %578 = vmatprep.subr.mxu0 0.0
    %579 = vmatpush1.msra.mxu0 0.0
    %580 = vmatprep.subr.mxu0 0.0
    %581 = vmatpush1.msra.mxu0 0.0
    %582 = vmatprep.subr.mxu0 0.0
    %583 = vmatpush1.msra.mxu0 0.0
    %584 = vmatprep.subr.mxu0 0.0
    %585 = vmatpush1.msra.mxu0 0.0
    %586 = vmatprep.subr.mxu0 0.0
    %587 = vmatpush1.msra.mxu0 0.0
    %588 = vmatprep.subr.mxu0 0.0
    %589 = vmatpush1.msra.mxu0 0.0
    %590 = vmatprep.subr.mxu0 0.0
    %591 = vmatpush1.msra.mxu0 0.0
    %592 = vmatprep.subr.mxu0 0.0
    %593 = vmatpush1.msra.mxu0 0.0
    %594 = vmatprep.subr.mxu0 0.0
    %595 = vmatpush1.msra.mxu0 0.0
    %596 = vmatprep.subr.mxu0 0.0
    %597 = vmatpush1.msra.mxu0 0.0
    %598 = vmatprep.subr.mxu0 0.0
    %599 = vmatpush1.msra.mxu0 0.0
    %600 = vmatprep.subr.mxu0 0.0
    %601 = vmatpush1.msra.mxu0 0.0
    %602 = vmatprep.subr.mxu0 0.0
    %603 = vmatpush1.msra.mxu0 0.0
    %604 = vmatprep.subr.mxu0 0.0
    %605 = vmatpush1.msra.mxu0 0.0
    %606 = vmatprep.subr.mxu0 0.0
    %607 = vmatpush1.msra.mxu0 0.0
    %608 = vmatprep.subr.mxu0 0.0
    %609 = vmatpush1.msra.mxu0 0.0
    %610 = vmatprep.mubr.f32.mxu0 0.0
    %611 = vmatmul.mubr.f32.gmra.mrb[0].mxu0 %v544
    %v612 = vpop.f32.mrb[0].mxu0
    %v613 = vadd.f32 0.0, %v612
    %v614 = vpop.f32.mrb[0].mxu0
    %615 = vdwg.mxu0
    %v617 = vrot.slane %v613, 7
    %v618 = vrot.slane %v613, 1
    %v619 = vrot.slane %v613, 2
    %v620 = vrot.slane %v613, 3
    %v621 = vrot.slane %v613, 4
    %v622 = vrot.slane %v613, 5
    %v623 = vrot.slane %v613, 6
    %v632 = vadd.f32 %v181, %v617
    %v633 = vadd.f32 %v186, %v613
    %v634 = vadd.f32 %v191, %v618
    %v635 = vadd.f32 %v196, %v619
    %v636 = vadd.f32 %v201, %v620
    %v637 = vadd.f32 %v206, %v621
    %v638 = vadd.f32 %v211, %v622
    %v639 = vadd.f32 %v216, %v623
    %v640 = vxor.u32 %v632, 2147483648
    %v641 = vxor.u32 %v633, 2147483648
    %v642 = vxor.u32 %v634, 2147483648
    %v643 = vxor.u32 %v635, 2147483648
    %v644 = vxor.u32 %v636, 2147483648
    %v645 = vxor.u32 %v637, 2147483648
    %v646 = vxor.u32 %v638, 2147483648
    %v647 = vxor.u32 %v639, 2147483648
    %v648 = vmul.f32 %v640, 1.442695
    %v649 = vpow.pop %v648
    %v650 = vmul.f32 %v641, 1.442695
    %v651 = vpow.pop %v650
    %v652 = vmul.f32 %v642, 1.442695
    %v653 = vpow.pop %v652
    %v654 = vmul.f32 %v643, 1.442695
    %v655 = vpow.pop %v654
    %v656 = vmul.f32 %v644, 1.442695
    %v657 = vpow.pop %v656
    %v658 = vmul.f32 %v645, 1.442695
    %v659 = vpow.pop %v658
    %v660 = vmul.f32 %v646, 1.442695
    %v661 = vpow.pop %v660
    %v662 = vmul.f32 %v647, 1.442695
    %v663 = vpow.pop %v662
    %v664 = vadd.f32 %v649, 1.0
    %v665 = vadd.f32 %v651, 1.0
    %v666 = vadd.f32 %v653, 1.0
    %v667 = vadd.f32 %v655, 1.0
    %v668 = vadd.f32 %v657, 1.0
    %v669 = vadd.f32 %v659, 1.0
    %v670 = vadd.f32 %v661, 1.0
    %v671 = vadd.f32 %v663, 1.0
    %v672 = vrcp.pop %v664
    %v673 = vmul.f32 1.0, %v672
    %v674 = vrcp.pop %v665
    %v675 = vmul.f32 1.0, %v674
    %v676 = vrcp.pop %v666
    %v677 = vmul.f32 1.0, %v676
    %v678 = vrcp.pop %v667
    %v679 = vmul.f32 1.0, %v678
    %v680 = vrcp.pop %v668
    %v681 = vmul.f32 1.0, %v680
    %v682 = vrcp.pop %v669
    %v683 = vmul.f32 1.0, %v682
    %v684 = vrcp.pop %v670
    %v685 = vmul.f32 1.0, %v684
    %v686 = vrcp.pop %v671
    %v687 = vmul.f32 1.0, %v686
    %v688 = vtanh.pop %v632
    %v689 = vtanh.pop %v633
    %v690 = vtanh.pop %v634
    %v691 = vtanh.pop %v635
    %v692 = vtanh.pop %v636
    %v693 = vtanh.pop %v637
    %v694 = vtanh.pop %v638
    %v695 = vtanh.pop %v639
    %v704 = vrot.slane %v457, 7
    %v705 = vrot.slane %v458, 7
    %v706 = vrot.slane %v459, 7
    %v707 = vrot.slane %v460, 7
    %v708 = vrot.slane %v461, 7
    %v709 = vrot.slane %v462, 7
    %v710 = vrot.slane %v463, 7
    %v711 = vrot.slane %v464, 7
    %v720 = vmul.f32 %v673, %v704
    %v721 = vmul.f32 %v675, %v705
    %v722 = vmul.f32 %v677, %v706
    %v723 = vmul.f32 %v679, %v707
    %v724 = vmul.f32 %v681, %v708
    %v725 = vmul.f32 %v683, %v709
    %v726 = vmul.f32 %v685, %v710
    %v727 = vmul.f32 %v687, %v711
    %736 = vrot.lane.b32.xlu0 %v688, 32
    %v737 = vpop.permute.xlu0 %736
    %738 = vrot.lane.b32.xlu0 %v689, 32
    %v739 = vpop.permute.xlu0 %738
    %740 = vrot.lane.b32.xlu0 %v690, 32
    %v741 = vpop.permute.xlu0 %740
    %742 = vrot.lane.b32.xlu0 %v691, 32
    %v743 = vpop.permute.xlu0 %742
    %744 = vrot.lane.b32.xlu0 %v692, 32
    %v745 = vpop.permute.xlu0 %744
    %746 = vrot.lane.b32.xlu0 %v693, 32
    %v747 = vpop.permute.xlu0 %746
    %748 = vrot.lane.b32.xlu0 %v694, 32
    %v749 = vpop.permute.xlu0 %748
    %750 = vrot.lane.b32.xlu0 %v695, 32
    %v751 = vpop.permute.xlu0 %750
    %v760 = vmul.f32 %v673, %v737
    %v761 = vmul.f32 %v675, %v739
    %v762 = vmul.f32 %v677, %v741
    %v763 = vmul.f32 %v679, %v743
    %v764 = vmul.f32 %v681, %v745
    %v765 = vmul.f32 %v683, %v747
    %v766 = vmul.f32 %v685, %v749
    %v767 = vmul.f32 %v687, %v751
    %776 = vrot.lane.b32.xlu0 %v760, 32
    %v777 = vpop.permute.xlu0 %776
    %778 = vrot.lane.b32.xlu0 %v761, 32
    %v779 = vpop.permute.xlu0 %778
    %780 = vrot.lane.b32.xlu0 %v762, 32
    %v781 = vpop.permute.xlu0 %780
    %782 = vrot.lane.b32.xlu0 %v763, 32
    %v783 = vpop.permute.xlu0 %782
    %784 = vrot.lane.b32.xlu0 %v764, 32
    %v785 = vpop.permute.xlu0 %784
    %786 = vrot.lane.b32.xlu0 %v765, 32
    %v787 = vpop.permute.xlu0 %786
    %788 = vrot.lane.b32.xlu0 %v766, 32
    %v789 = vpop.permute.xlu0 %788
    %790 = vrot.lane.b32.xlu0 %v767, 32
    %v791 = vpop.permute.xlu0 %790
    %v800 = vadd.f32 %v720, %v777
    %v801 = vadd.f32 %v721, %v779
    %v802 = vadd.f32 %v722, %v781
    %v803 = vadd.f32 %v723, %v783
    %v804 = vadd.f32 %v724, %v785
    %v805 = vadd.f32 %v725, %v787
    %v806 = vadd.f32 %v726, %v789
    %v807 = vadd.f32 %v727, %v791
    %v808 = vtanh.pop %v800
    %v809 = vtanh.pop %v801
    %v810 = vtanh.pop %v802
    %v811 = vtanh.pop %v803
    %v812 = vtanh.pop %v804
    %v813 = vtanh.pop %v805
    %v814 = vtanh.pop %v806
    %v815 = vtanh.pop %v807
    %824 = vrot.lane.b32.xlu0 %v808, 32
    %v825 = vpop.permute.xlu0 %824
    %826 = vrot.lane.b32.xlu0 %v809, 32
    %v827 = vpop.permute.xlu0 %826
    %828 = vrot.lane.b32.xlu0 %v810, 32
    %v829 = vpop.permute.xlu0 %828
    %830 = vrot.lane.b32.xlu0 %v811, 32
    %v831 = vpop.permute.xlu0 %830
    %832 = vrot.lane.b32.xlu0 %v812, 32
    %v833 = vpop.permute.xlu0 %832
    %834 = vrot.lane.b32.xlu0 %v813, 32
    %v835 = vpop.permute.xlu0 %834
    %836 = vrot.lane.b32.xlu0 %v814, 32
    %v837 = vpop.permute.xlu0 %836
    %838 = vrot.lane.b32.xlu0 %v815, 32
    %v839 = vpop.permute.xlu0 %838
    %v848 = vmul.f32 %v673, %v825
    %v849 = vmul.f32 %v675, %v827
    %v850 = vmul.f32 %v677, %v829
    %v851 = vmul.f32 %v679, %v831
    %v852 = vmul.f32 %v681, %v833
    %v853 = vmul.f32 %v683, %v835
    %v854 = vmul.f32 %v685, %v837
    %v855 = vmul.f32 %v687, %v839
    %v864 = vrot.slane %v848, 1
    %v865 = vsel %vm522, %v849, %v864
    %v866 = vrot.slane %v850, 7
    %v867 = vsel %vm525, %v866, %v865
    %v868 = vrot.slane %v851, 6
    %v869 = vsel %vm528, %v868, %v867
    %v870 = vrot.slane %v852, 5
    %v871 = vsel %vm531, %v870, %v869
    %v872 = vrot.slane %v853, 4
    %v873 = vsel %vm534, %v872, %v871
    %v874 = vrot.slane %v854, 3
    %v875 = vsel %vm537, %v874, %v873
    %v876 = vrot.slane %v855, 2
    %v877 = vsel %vm540, %v876, %v875
    %878 = vrot.lane.b32.xlu0 %v877, 64
    %v879 = vpop.permute.xlu0 %878
    %v880 = vsel %vm223, %v879, 0
    %882 = vmatprep.subr.mxu0 0.0
    %883 = vmatpush1.msra.mxu0 %v219
    %884 = vmatprep.subr.mxu0 0.0
    %885 = vmatpush1.msra.mxu0 %v220
    %886 = vmatprep.subr.mxu0 0.0
    %887 = vmatpush1.msra.mxu0 %v221
    %888 = vmatprep.subr.mxu0 0.0
    %889 = vmatpush1.msra.mxu0 %v222
    %890 = vmatprep.subr.mxu0 0.0
    %891 = vmatpush1.msra.mxu0 0.0
    %892 = vmatprep.subr.mxu0 0.0
    %893 = vmatpush1.msra.mxu0 0.0
    %894 = vmatprep.subr.mxu0 0.0
    %895 = vmatpush1.msra.mxu0 0.0
    %896 = vmatprep.subr.mxu0 0.0
    %897 = vmatpush1.msra.mxu0 0.0
    %898 = vmatprep.subr.mxu0 0.0
    %899 = vmatpush1.msra.mxu0 0.0
    %900 = vmatprep.subr.mxu0 0.0
    %901 = vmatpush1.msra.mxu0 0.0
    %902 = vmatprep.subr.mxu0 0.0
    %903 = vmatpush1.msra.mxu0 0.0
    %904 = vmatprep.subr.mxu0 0.0
    %905 = vmatpush1.msra.mxu0 0.0
    %906 = vmatprep.subr.mxu0 0.0
    %907 = vmatpush1.msra.mxu0 0.0
    %908 = vmatprep.subr.mxu0 0.0
    %909 = vmatpush1.msra.mxu0 0.0
    %910 = vmatprep.subr.mxu0 0.0
    %911 = vmatpush1.msra.mxu0 0.0
    %912 = vmatprep.subr.mxu0 0.0
    %913 = vmatpush1.msra.mxu0 0.0
    %914 = vmatprep.subr.mxu0 0.0
    %915 = vmatpush1.msra.mxu0 0.0
    %916 = vmatprep.subr.mxu0 0.0
    %917 = vmatpush1.msra.mxu0 0.0
    %918 = vmatprep.subr.mxu0 0.0
    %919 = vmatpush1.msra.mxu0 0.0
    %920 = vmatprep.subr.mxu0 0.0
    %921 = vmatpush1.msra.mxu0 0.0
    %922 = vmatprep.subr.mxu0 0.0
    %923 = vmatpush1.msra.mxu0 0.0
    %924 = vmatprep.subr.mxu0 0.0
    %925 = vmatpush1.msra.mxu0 0.0
    %926 = vmatprep.subr.mxu0 0.0
    %927 = vmatpush1.msra.mxu0 0.0
    %928 = vmatprep.subr.mxu0 0.0
    %929 = vmatpush1.msra.mxu0 0.0
    %930 = vmatprep.subr.mxu0 0.0
    %931 = vmatpush1.msra.mxu0 0.0
    %932 = vmatprep.subr.mxu0 0.0
    %933 = vmatpush1.msra.mxu0 0.0
    %934 = vmatprep.subr.mxu0 0.0
    %935 = vmatpush1.msra.mxu0 0.0
    %936 = vmatprep.subr.mxu0 0.0
    %937 = vmatpush1.msra.mxu0 0.0
    %938 = vmatprep.subr.mxu0 0.0
    %939 = vmatpush1.msra.mxu0 0.0
    %940 = vmatprep.subr.mxu0 0.0
    %941 = vmatpush1.msra.mxu0 0.0
    %942 = vmatprep.subr.mxu0 0.0
    %943 = vmatpush1.msra.mxu0 0.0
    %944 = vmatprep.subr.mxu0 0.0
    %945 = vmatpush1.msra.mxu0 0.0
    %946 = vmatprep.mubr.f32.mxu0 0.0
    %947 = vmatmul.mubr.f32.gmra.mrb[0].mxu0 %v880
    %v948 = vpop.f32.mrb[0].mxu0
    %v949 = vadd.f32 0.0, %v948
    %v950 = vpop.f32.mrb[0].mxu0
    %951 = vdwg.mxu0
    %v953 = vrot.slane %v949, 6
    %v954 = vrot.slane %v949, 7
    %v955 = vrot.slane %v949, 1
    %v956 = vrot.slane %v949, 2
    %v957 = vrot.slane %v949, 3
    %v958 = vrot.slane %v949, 4
    %v959 = vrot.slane %v949, 5
    %v968 = vadd.f32 %v181, %v953
    %v969 = vadd.f32 %v186, %v954
    %v970 = vadd.f32 %v191, %v949
    %v971 = vadd.f32 %v196, %v955
    %v972 = vadd.f32 %v201, %v956
    %v973 = vadd.f32 %v206, %v957
    %v974 = vadd.f32 %v211, %v958
    %v975 = vadd.f32 %v216, %v959
    %v976 = vxor.u32 %v968, 2147483648
    %v977 = vxor.u32 %v969, 2147483648
    %v978 = vxor.u32 %v970, 2147483648
    %v979 = vxor.u32 %v971, 2147483648
    %v980 = vxor.u32 %v972, 2147483648
    %v981 = vxor.u32 %v973, 2147483648
    %v982 = vxor.u32 %v974, 2147483648
    %v983 = vxor.u32 %v975, 2147483648
    %v984 = vmul.f32 %v976, 1.442695
    %v985 = vpow.pop %v984
    %v986 = vmul.f32 %v977, 1.442695
    %v987 = vpow.pop %v986
    %v988 = vmul.f32 %v978, 1.442695
    %v989 = vpow.pop %v988
    %v990 = vmul.f32 %v979, 1.442695
    %v991 = vpow.pop %v990
    %v992 = vmul.f32 %v980, 1.442695
    %v993 = vpow.pop %v992
    %v994 = vmul.f32 %v981, 1.442695
    %v995 = vpow.pop %v994
    %v996 = vmul.f32 %v982, 1.442695
    %v997 = vpow.pop %v996
    %v998 = vmul.f32 %v983, 1.442695
    %v999 = vpow.pop %v998
    %v1000 = vadd.f32 %v985, 1.0
    %v1001 = vadd.f32 %v987, 1.0
    %v1002 = vadd.f32 %v989, 1.0
    %v1003 = vadd.f32 %v991, 1.0
    %v1004 = vadd.f32 %v993, 1.0
    %v1005 = vadd.f32 %v995, 1.0
    %v1006 = vadd.f32 %v997, 1.0
    %v1007 = vadd.f32 %v999, 1.0
    %v1008 = vrcp.pop %v1000
    %v1009 = vmul.f32 1.0, %v1008
    %v1010 = vrcp.pop %v1001
    %v1011 = vmul.f32 1.0, %v1010
    %v1012 = vrcp.pop %v1002
    %v1013 = vmul.f32 1.0, %v1012
    %v1014 = vrcp.pop %v1003
    %v1015 = vmul.f32 1.0, %v1014
    %v1016 = vrcp.pop %v1004
    %v1017 = vmul.f32 1.0, %v1016
    %v1018 = vrcp.pop %v1005
    %v1019 = vmul.f32 1.0, %v1018
    %v1020 = vrcp.pop %v1006
    %v1021 = vmul.f32 1.0, %v1020
    %v1022 = vrcp.pop %v1007
    %v1023 = vmul.f32 1.0, %v1022
    %v1024 = vtanh.pop %v968
    %v1025 = vtanh.pop %v969
    %v1026 = vtanh.pop %v970
    %v1027 = vtanh.pop %v971
    %v1028 = vtanh.pop %v972
    %v1029 = vtanh.pop %v973
    %v1030 = vtanh.pop %v974
    %v1031 = vtanh.pop %v975
    %v1040 = vrot.slane %v800, 7
    %v1041 = vrot.slane %v801, 7
    %v1042 = vrot.slane %v802, 7
    %v1043 = vrot.slane %v803, 7
    %v1044 = vrot.slane %v804, 7
    %v1045 = vrot.slane %v805, 7
    %v1046 = vrot.slane %v806, 7
    %v1047 = vrot.slane %v807, 7
    %v1056 = vmul.f32 %v1009, %v1040
    %v1057 = vmul.f32 %v1011, %v1041
    %v1058 = vmul.f32 %v1013, %v1042
    %v1059 = vmul.f32 %v1015, %v1043
    %v1060 = vmul.f32 %v1017, %v1044
    %v1061 = vmul.f32 %v1019, %v1045
    %v1062 = vmul.f32 %v1021, %v1046
    %v1063 = vmul.f32 %v1023, %v1047
    %1072 = vrot.lane.b32.xlu0 %v1024, 32
    %v1073 = vpop.permute.xlu0 %1072
    %1074 = vrot.lane.b32.xlu0 %v1025, 32
    %v1075 = vpop.permute.xlu0 %1074
    %1076 = vrot.lane.b32.xlu0 %v1026, 32
    %v1077 = vpop.permute.xlu0 %1076
    %1078 = vrot.lane.b32.xlu0 %v1027, 32
    %v1079 = vpop.permute.xlu0 %1078
    %1080 = vrot.lane.b32.xlu0 %v1028, 32
    %v1081 = vpop.permute.xlu0 %1080
    %1082 = vrot.lane.b32.xlu0 %v1029, 32
    %v1083 = vpop.permute.xlu0 %1082
    %1084 = vrot.lane.b32.xlu0 %v1030, 32
    %v1085 = vpop.permute.xlu0 %1084
    %1086 = vrot.lane.b32.xlu0 %v1031, 32
    %v1087 = vpop.permute.xlu0 %1086
    %v1096 = vmul.f32 %v1009, %v1073
    %v1097 = vmul.f32 %v1011, %v1075
    %v1098 = vmul.f32 %v1013, %v1077
    %v1099 = vmul.f32 %v1015, %v1079
    %v1100 = vmul.f32 %v1017, %v1081
    %v1101 = vmul.f32 %v1019, %v1083
    %v1102 = vmul.f32 %v1021, %v1085
    %v1103 = vmul.f32 %v1023, %v1087
    %1112 = vrot.lane.b32.xlu0 %v1096, 32
    %v1113 = vpop.permute.xlu0 %1112
    %1114 = vrot.lane.b32.xlu0 %v1097, 32
    %v1115 = vpop.permute.xlu0 %1114
    %1116 = vrot.lane.b32.xlu0 %v1098, 32
    %v1117 = vpop.permute.xlu0 %1116
    %1118 = vrot.lane.b32.xlu0 %v1099, 32
    %v1119 = vpop.permute.xlu0 %1118
    %1120 = vrot.lane.b32.xlu0 %v1100, 32
    %v1121 = vpop.permute.xlu0 %1120
    %1122 = vrot.lane.b32.xlu0 %v1101, 32
    %v1123 = vpop.permute.xlu0 %1122
    %1124 = vrot.lane.b32.xlu0 %v1102, 32
    %v1125 = vpop.permute.xlu0 %1124
    %1126 = vrot.lane.b32.xlu0 %v1103, 32
    %v1127 = vpop.permute.xlu0 %1126
    %v1136 = vadd.f32 %v1056, %v1113
    %v1137 = vadd.f32 %v1057, %v1115
    %v1138 = vadd.f32 %v1058, %v1117
    %v1139 = vadd.f32 %v1059, %v1119
    %v1140 = vadd.f32 %v1060, %v1121
    %v1141 = vadd.f32 %v1061, %v1123
    %v1142 = vadd.f32 %v1062, %v1125
    %v1143 = vadd.f32 %v1063, %v1127
    %v1144 = vtanh.pop %v1136
    %v1145 = vtanh.pop %v1137
    %v1146 = vtanh.pop %v1138
    %v1147 = vtanh.pop %v1139
    %v1148 = vtanh.pop %v1140
    %v1149 = vtanh.pop %v1141
    %v1150 = vtanh.pop %v1142
    %v1151 = vtanh.pop %v1143
    %1160 = vrot.lane.b32.xlu0 %v1144, 32
    %v1161 = vpop.permute.xlu0 %1160
    %1162 = vrot.lane.b32.xlu0 %v1145, 32
    %v1163 = vpop.permute.xlu0 %1162
    %1164 = vrot.lane.b32.xlu0 %v1146, 32
    %v1165 = vpop.permute.xlu0 %1164
    %1166 = vrot.lane.b32.xlu0 %v1147, 32
    %v1167 = vpop.permute.xlu0 %1166
    %1168 = vrot.lane.b32.xlu0 %v1148, 32
    %v1169 = vpop.permute.xlu0 %1168
    %1170 = vrot.lane.b32.xlu0 %v1149, 32
    %v1171 = vpop.permute.xlu0 %1170
    %1172 = vrot.lane.b32.xlu0 %v1150, 32
    %v1173 = vpop.permute.xlu0 %1172
    %1174 = vrot.lane.b32.xlu0 %v1151, 32
    %v1175 = vpop.permute.xlu0 %1174
    %v1184 = vmul.f32 %v1009, %v1161
    %v1185 = vmul.f32 %v1011, %v1163
    %v1186 = vmul.f32 %v1013, %v1165
    %v1187 = vmul.f32 %v1015, %v1167
    %v1188 = vmul.f32 %v1017, %v1169
    %v1189 = vmul.f32 %v1019, %v1171
    %v1190 = vmul.f32 %v1021, %v1173
    %v1191 = vmul.f32 %v1023, %v1175
    %v1200 = vrot.slane %v1184, 2
    %v1201 = vrot.slane %v1185, 1
    %v1202 = vsel %vm522, %v1201, %v1200
    %v1203 = vsel %vm525, %v1186, %v1202
    %v1204 = vrot.slane %v1187, 7
    %v1205 = vsel %vm528, %v1204, %v1203
    %v1206 = vrot.slane %v1188, 6
    %v1207 = vsel %vm531, %v1206, %v1205
    %v1208 = vrot.slane %v1189, 5
    %v1209 = vsel %vm534, %v1208, %v1207
    %v1210 = vrot.slane %v1190, 4
    %v1211 = vsel %vm537, %v1210, %v1209
    %v1212 = vrot.slane %v1191, 3
    %v1213 = vsel %vm540, %v1212, %v1211
    %1214 = vrot.lane.b32.xlu0 %v1213, 64
    %v1215 = vpop.permute.xlu0 %1214
    %v1216 = vsel %vm223, %v1215, 0
    %1218 = vmatprep.subr.mxu0 0.0
    %1219 = vmatpush1.msra.mxu0 %v219
    %1220 = vmatprep.subr.mxu0 0.0
    %1221 = vmatpush1.msra.mxu0 %v220
    %1222 = vmatprep.subr.mxu0 0.0
    %1223 = vmatpush1.msra.mxu0 %v221
    %1224 = vmatprep.subr.mxu0 0.0
    %1225 = vmatpush1.msra.mxu0 %v222
    %1226 = vmatprep.subr.mxu0 0.0
    %1227 = vmatpush1.msra.mxu0 0.0
    %1228 = vmatprep.subr.mxu0 0.0
    %1229 = vmatpush1.msra.mxu0 0.0
    %1230 = vmatprep.subr.mxu0 0.0
    %1231 = vmatpush1.msra.mxu0 0.0
    %1232 = vmatprep.subr.mxu0 0.0
    %1233 = vmatpush1.msra.mxu0 0.0
    %1234 = vmatprep.subr.mxu0 0.0
    %1235 = vmatpush1.msra.mxu0 0.0
    %1236 = vmatprep.subr.mxu0 0.0
    %1237 = vmatpush1.msra.mxu0 0.0
    %1238 = vmatprep.subr.mxu0 0.0
    %1239 = vmatpush1.msra.mxu0 0.0
    %1240 = vmatprep.subr.mxu0 0.0
    %1241 = vmatpush1.msra.mxu0 0.0
    %1242 = vmatprep.subr.mxu0 0.0
    %1243 = vmatpush1.msra.mxu0 0.0
    %1244 = vmatprep.subr.mxu0 0.0
    %1245 = vmatpush1.msra.mxu0 0.0
    %1246 = vmatprep.subr.mxu0 0.0
    %1247 = vmatpush1.msra.mxu0 0.0
    %1248 = vmatprep.subr.mxu0 0.0
    %1249 = vmatpush1.msra.mxu0 0.0
    %1250 = vmatprep.subr.mxu0 0.0
    %1251 = vmatpush1.msra.mxu0 0.0
    %1252 = vmatprep.subr.mxu0 0.0
    %1253 = vmatpush1.msra.mxu0 0.0
    %1254 = vmatprep.subr.mxu0 0.0
    %1255 = vmatpush1.msra.mxu0 0.0
    %1256 = vmatprep.subr.mxu0 0.0
    %1257 = vmatpush1.msra.mxu0 0.0
    %1258 = vmatprep.subr.mxu0 0.0
    %1259 = vmatpush1.msra.mxu0 0.0
    %1260 = vmatprep.subr.mxu0 0.0
    %1261 = vmatpush1.msra.mxu0 0.0
    %1262 = vmatprep.subr.mxu0 0.0
    %1263 = vmatpush1.msra.mxu0 0.0
    %1264 = vmatprep.subr.mxu0 0.0
    %1265 = vmatpush1.msra.mxu0 0.0
    %1266 = vmatprep.subr.mxu0 0.0
    %1267 = vmatpush1.msra.mxu0 0.0
    %1268 = vmatprep.subr.mxu0 0.0
    %1269 = vmatpush1.msra.mxu0 0.0
    %1270 = vmatprep.subr.mxu0 0.0
    %1271 = vmatpush1.msra.mxu0 0.0
    %1272 = vmatprep.subr.mxu0 0.0
    %1273 = vmatpush1.msra.mxu0 0.0
    %1274 = vmatprep.subr.mxu0 0.0
    %1275 = vmatpush1.msra.mxu0 0.0
    %1276 = vmatprep.subr.mxu0 0.0
    %1277 = vmatpush1.msra.mxu0 0.0
    %1278 = vmatprep.subr.mxu0 0.0
    %1279 = vmatpush1.msra.mxu0 0.0
    %1280 = vmatprep.subr.mxu0 0.0
    %1281 = vmatpush1.msra.mxu0 0.0
    %1282 = vmatprep.mubr.f32.mxu0 0.0
    %1283 = vmatmul.mubr.f32.gmra.mrb[0].mxu0 %v1216
    %v1284 = vpop.f32.mrb[0].mxu0
    %v1285 = vadd.f32 0.0, %v1284
    %v1286 = vpop.f32.mrb[0].mxu0
    %1287 = vdwg.mxu0
    %v1289 = vrot.slane %v1285, 5
    %v1290 = vrot.slane %v1285, 6
    %v1291 = vrot.slane %v1285, 7
    %v1292 = vrot.slane %v1285, 1
    %v1293 = vrot.slane %v1285, 2
    %v1294 = vrot.slane %v1285, 3
    %v1295 = vrot.slane %v1285, 4
    %v1304 = vadd.f32 %v181, %v1289
    %v1305 = vadd.f32 %v186, %v1290
    %v1306 = vadd.f32 %v191, %v1291
    %v1307 = vadd.f32 %v196, %v1285
    %v1308 = vadd.f32 %v201, %v1292
    %v1309 = vadd.f32 %v206, %v1293
    %v1310 = vadd.f32 %v211, %v1294
    %v1311 = vadd.f32 %v216, %v1295
    %v1312 = vxor.u32 %v1304, 2147483648
    %v1313 = vxor.u32 %v1305, 2147483648
    %v1314 = vxor.u32 %v1306, 2147483648
    %v1315 = vxor.u32 %v1307, 2147483648
    %v1316 = vxor.u32 %v1308, 2147483648
    %v1317 = vxor.u32 %v1309, 2147483648
    %v1318 = vxor.u32 %v1310, 2147483648
    %v1319 = vxor.u32 %v1311, 2147483648
    %v1320 = vmul.f32 %v1312, 1.442695
    %v1321 = vpow.pop %v1320
    %v1322 = vmul.f32 %v1313, 1.442695
    %v1323 = vpow.pop %v1322
    %v1324 = vmul.f32 %v1314, 1.442695
    %v1325 = vpow.pop %v1324
    %v1326 = vmul.f32 %v1315, 1.442695
    %v1327 = vpow.pop %v1326
    %v1328 = vmul.f32 %v1316, 1.442695
    %v1329 = vpow.pop %v1328
    %v1330 = vmul.f32 %v1317, 1.442695
    %v1331 = vpow.pop %v1330
    %v1332 = vmul.f32 %v1318, 1.442695
    %v1333 = vpow.pop %v1332
    %v1334 = vmul.f32 %v1319, 1.442695
    %v1335 = vpow.pop %v1334
    %v1336 = vadd.f32 %v1321, 1.0
    %v1337 = vadd.f32 %v1323, 1.0
    %v1338 = vadd.f32 %v1325, 1.0
    %v1339 = vadd.f32 %v1327, 1.0
    %v1340 = vadd.f32 %v1329, 1.0
    %v1341 = vadd.f32 %v1331, 1.0
    %v1342 = vadd.f32 %v1333, 1.0
    %v1343 = vadd.f32 %v1335, 1.0
    %v1344 = vrcp.pop %v1336
    %v1345 = vmul.f32 1.0, %v1344
    %v1346 = vrcp.pop %v1337
    %v1347 = vmul.f32 1.0, %v1346
    %v1348 = vrcp.pop %v1338
    %v1349 = vmul.f32 1.0, %v1348
    %v1350 = vrcp.pop %v1339
    %v1351 = vmul.f32 1.0, %v1350
    %v1352 = vrcp.pop %v1340
    %v1353 = vmul.f32 1.0, %v1352
    %v1354 = vrcp.pop %v1341
    %v1355 = vmul.f32 1.0, %v1354
    %v1356 = vrcp.pop %v1342
    %v1357 = vmul.f32 1.0, %v1356
    %v1358 = vrcp.pop %v1343
    %v1359 = vmul.f32 1.0, %v1358
    %v1360 = vtanh.pop %v1304
    %v1361 = vtanh.pop %v1305
    %v1362 = vtanh.pop %v1306
    %v1363 = vtanh.pop %v1307
    %v1364 = vtanh.pop %v1308
    %v1365 = vtanh.pop %v1309
    %v1366 = vtanh.pop %v1310
    %v1367 = vtanh.pop %v1311
    %v1376 = vrot.slane %v1136, 7
    %v1377 = vrot.slane %v1137, 7
    %v1378 = vrot.slane %v1138, 7
    %v1379 = vrot.slane %v1139, 7
    %v1380 = vrot.slane %v1140, 7
    %v1381 = vrot.slane %v1141, 7
    %v1382 = vrot.slane %v1142, 7
    %v1383 = vrot.slane %v1143, 7
    %v1392 = vmul.f32 %v1345, %v1376
    %v1393 = vmul.f32 %v1347, %v1377
    %v1394 = vmul.f32 %v1349, %v1378
    %v1395 = vmul.f32 %v1351, %v1379
    %v1396 = vmul.f32 %v1353, %v1380
    %v1397 = vmul.f32 %v1355, %v1381
    %v1398 = vmul.f32 %v1357, %v1382
    %v1399 = vmul.f32 %v1359, %v1383
    %1408 = vrot.lane.b32.xlu0 %v1360, 32
    %v1409 = vpop.permute.xlu0 %1408
    %1410 = vrot.lane.b32.xlu0 %v1361, 32
    %v1411 = vpop.permute.xlu0 %1410
    %1412 = vrot.lane.b32.xlu0 %v1362, 32
    %v1413 = vpop.permute.xlu0 %1412
    %1414 = vrot.lane.b32.xlu0 %v1363, 32
    %v1415 = vpop.permute.xlu0 %1414
    %1416 = vrot.lane.b32.xlu0 %v1364, 32
    %v1417 = vpop.permute.xlu0 %1416
    %1418 = vrot.lane.b32.xlu0 %v1365, 32
    %v1419 = vpop.permute.xlu0 %1418
    %1420 = vrot.lane.b32.xlu0 %v1366, 32
    %v1421 = vpop.permute.xlu0 %1420
    %1422 = vrot.lane.b32.xlu0 %v1367, 32
    %v1423 = vpop.permute.xlu0 %1422
    %v1432 = vmul.f32 %v1345, %v1409
    %v1433 = vmul.f32 %v1347, %v1411
    %v1434 = vmul.f32 %v1349, %v1413
    %v1435 = vmul.f32 %v1351, %v1415
    %v1436 = vmul.f32 %v1353, %v1417
    %v1437 = vmul.f32 %v1355, %v1419
    %v1438 = vmul.f32 %v1357, %v1421
    %v1439 = vmul.f32 %v1359, %v1423
    %1448 = vrot.lane.b32.xlu0 %v1432, 32
    %v1449 = vpop.permute.xlu0 %1448
    %1450 = vrot.lane.b32.xlu0 %v1433, 32
    %v1451 = vpop.permute.xlu0 %1450
    %1452 = vrot.lane.b32.xlu0 %v1434, 32
    %v1453 = vpop.permute.xlu0 %1452
    %1454 = vrot.lane.b32.xlu0 %v1435, 32
    %v1455 = vpop.permute.xlu0 %1454
    %1456 = vrot.lane.b32.xlu0 %v1436, 32
    %v1457 = vpop.permute.xlu0 %1456
    %1458 = vrot.lane.b32.xlu0 %v1437, 32
    %v1459 = vpop.permute.xlu0 %1458
    %1460 = vrot.lane.b32.xlu0 %v1438, 32
    %v1461 = vpop.permute.xlu0 %1460
    %1462 = vrot.lane.b32.xlu0 %v1439, 32
    %v1463 = vpop.permute.xlu0 %1462
    %v1472 = vadd.f32 %v1392, %v1449
    %v1473 = vadd.f32 %v1393, %v1451
    %v1474 = vadd.f32 %v1394, %v1453
    %v1475 = vadd.f32 %v1395, %v1455
    %v1476 = vadd.f32 %v1396, %v1457
    %v1477 = vadd.f32 %v1397, %v1459
    %v1478 = vadd.f32 %v1398, %v1461
    %v1479 = vadd.f32 %v1399, %v1463
    %v1480 = vtanh.pop %v1472
    %v1481 = vtanh.pop %v1473
    %v1482 = vtanh.pop %v1474
    %v1483 = vtanh.pop %v1475
    %v1484 = vtanh.pop %v1476
    %v1485 = vtanh.pop %v1477
    %v1486 = vtanh.pop %v1478
    %v1487 = vtanh.pop %v1479
    %1496 = vrot.lane.b32.xlu0 %v1480, 32
    %v1497 = vpop.permute.xlu0 %1496
    %1498 = vrot.lane.b32.xlu0 %v1481, 32
    %v1499 = vpop.permute.xlu0 %1498
    %1500 = vrot.lane.b32.xlu0 %v1482, 32
    %v1501 = vpop.permute.xlu0 %1500
    %1502 = vrot.lane.b32.xlu0 %v1483, 32
    %v1503 = vpop.permute.xlu0 %1502
    %1504 = vrot.lane.b32.xlu0 %v1484, 32
    %v1505 = vpop.permute.xlu0 %1504
    %1506 = vrot.lane.b32.xlu0 %v1485, 32
    %v1507 = vpop.permute.xlu0 %1506
    %1508 = vrot.lane.b32.xlu0 %v1486, 32
    %v1509 = vpop.permute.xlu0 %1508
    %1510 = vrot.lane.b32.xlu0 %v1487, 32
    %v1511 = vpop.permute.xlu0 %1510
    %v1520 = vmul.f32 %v1345, %v1497
    %v1521 = vmul.f32 %v1347, %v1499
    %v1522 = vmul.f32 %v1349, %v1501
    %v1523 = vmul.f32 %v1351, %v1503
    %v1524 = vmul.f32 %v1353, %v1505
    %v1525 = vmul.f32 %v1355, %v1507
    %v1526 = vmul.f32 %v1357, %v1509
    %v1527 = vmul.f32 %v1359, %v1511
    %v1536 = vrot.slane %v1520, 3
    %v1537 = vrot.slane %v1521, 2
    %v1538 = vsel %vm522, %v1537, %v1536
    %v1539 = vrot.slane %v1522, 1
    %v1540 = vsel %vm525, %v1539, %v1538
    %v1541 = vsel %vm528, %v1523, %v1540
    %v1542 = vrot.slane %v1524, 7
    %v1543 = vsel %vm531, %v1542, %v1541
    %v1544 = vrot.slane %v1525, 6
    %v1545 = vsel %vm534, %v1544, %v1543
    %v1546 = vrot.slane %v1526, 5
    %v1547 = vsel %vm537, %v1546, %v1545
    %v1548 = vrot.slane %v1527, 4
    %v1549 = vsel %vm540, %v1548, %v1547
    %1550 = vrot.lane.b32.xlu0 %v1549, 64
    %v1551 = vpop.permute.xlu0 %1550
    %v1552 = vsel %vm223, %v1551, 0
    %1554 = vmatprep.subr.mxu0 0.0
    %1555 = vmatpush1.msra.mxu0 %v219
    %1556 = vmatprep.subr.mxu0 0.0
    %1557 = vmatpush1.msra.mxu0 %v220
    %1558 = vmatprep.subr.mxu0 0.0
    %1559 = vmatpush1.msra.mxu0 %v221
    %1560 = vmatprep.subr.mxu0 0.0
    %1561 = vmatpush1.msra.mxu0 %v222
    %1562 = vmatprep.subr.mxu0 0.0
    %1563 = vmatpush1.msra.mxu0 0.0
    %1564 = vmatprep.subr.mxu0 0.0
    %1565 = vmatpush1.msra.mxu0 0.0
    %1566 = vmatprep.subr.mxu0 0.0
    %1567 = vmatpush1.msra.mxu0 0.0
    %1568 = vmatprep.subr.mxu0 0.0
    %1569 = vmatpush1.msra.mxu0 0.0
    %1570 = vmatprep.subr.mxu0 0.0
    %1571 = vmatpush1.msra.mxu0 0.0
    %1572 = vmatprep.subr.mxu0 0.0
    %1573 = vmatpush1.msra.mxu0 0.0
    %1574 = vmatprep.subr.mxu0 0.0
    %1575 = vmatpush1.msra.mxu0 0.0
    %1576 = vmatprep.subr.mxu0 0.0
    %1577 = vmatpush1.msra.mxu0 0.0
    %1578 = vmatprep.subr.mxu0 0.0
    %1579 = vmatpush1.msra.mxu0 0.0
    %1580 = vmatprep.subr.mxu0 0.0
    %1581 = vmatpush1.msra.mxu0 0.0
    %1582 = vmatprep.subr.mxu0 0.0
    %1583 = vmatpush1.msra.mxu0 0.0
    %1584 = vmatprep.subr.mxu0 0.0
    %1585 = vmatpush1.msra.mxu0 0.0
    %1586 = vmatprep.subr.mxu0 0.0
    %1587 = vmatpush1.msra.mxu0 0.0
    %1588 = vmatprep.subr.mxu0 0.0
    %1589 = vmatpush1.msra.mxu0 0.0
    %1590 = vmatprep.subr.mxu0 0.0
    %1591 = vmatpush1.msra.mxu0 0.0
    %1592 = vmatprep.subr.mxu0 0.0
    %1593 = vmatpush1.msra.mxu0 0.0
    %1594 = vmatprep.subr.mxu0 0.0
    %1595 = vmatpush1.msra.mxu0 0.0
    %1596 = vmatprep.subr.mxu0 0.0
    %1597 = vmatpush1.msra.mxu0 0.0
    %1598 = vmatprep.subr.mxu0 0.0
    %1599 = vmatpush1.msra.mxu0 0.0
    %1600 = vmatprep.subr.mxu0 0.0
    %1601 = vmatpush1.msra.mxu0 0.0
    %1602 = vmatprep.subr.mxu0 0.0
    %1603 = vmatpush1.msra.mxu0 0.0
    %1604 = vmatprep.subr.mxu0 0.0
    %1605 = vmatpush1.msra.mxu0 0.0
    %1606 = vmatprep.subr.mxu0 0.0
    %1607 = vmatpush1.msra.mxu0 0.0
    %1608 = vmatprep.subr.mxu0 0.0
    %1609 = vmatpush1.msra.mxu0 0.0
    %1610 = vmatprep.subr.mxu0 0.0
    %1611 = vmatpush1.msra.mxu0 0.0
    %1612 = vmatprep.subr.mxu0 0.0
    %1613 = vmatpush1.msra.mxu0 0.0
    %1614 = vmatprep.subr.mxu0 0.0
    %1615 = vmatpush1.msra.mxu0 0.0
    %1616 = vmatprep.subr.mxu0 0.0
    %1617 = vmatpush1.msra.mxu0 0.0
    %1618 = vmatprep.mubr.f32.mxu0 0.0
    %1619 = vmatmul.mubr.f32.gmra.mrb[0].mxu0 %v1552
    %v1620 = vpop.f32.mrb[0].mxu0
    %v1621 = vadd.f32 0.0, %v1620
    %v1622 = vpop.f32.mrb[0].mxu0
    %1623 = vdwg.mxu0
    %v1625 = vrot.slane %v1621, 4
    %v1626 = vrot.slane %v1621, 5
    %v1627 = vrot.slane %v1621, 6
    %v1628 = vrot.slane %v1621, 7
    %v1629 = vrot.slane %v1621, 1
    %v1630 = vrot.slane %v1621, 2
    %v1631 = vrot.slane %v1621, 3
    %v1640 = vadd.f32 %v181, %v1625
    %v1641 = vadd.f32 %v186, %v1626
    %v1642 = vadd.f32 %v191, %v1627
    %v1643 = vadd.f32 %v196, %v1628
    %v1644 = vadd.f32 %v201, %v1621
    %v1645 = vadd.f32 %v206, %v1629
    %v1646 = vadd.f32 %v211, %v1630
    %v1647 = vadd.f32 %v216, %v1631
    %v1648 = vxor.u32 %v1640, 2147483648
    %v1649 = vxor.u32 %v1641, 2147483648
    %v1650 = vxor.u32 %v1642, 2147483648
    %v1651 = vxor.u32 %v1643, 2147483648
    %v1652 = vxor.u32 %v1644, 2147483648
    %v1653 = vxor.u32 %v1645, 2147483648
    %v1654 = vxor.u32 %v1646, 2147483648
    %v1655 = vxor.u32 %v1647, 2147483648
    %v1656 = vmul.f32 %v1648, 1.442695
    %v1657 = vpow.pop %v1656
    %v1658 = vmul.f32 %v1649, 1.442695
    %v1659 = vpow.pop %v1658
    %v1660 = vmul.f32 %v1650, 1.442695
    %v1661 = vpow.pop %v1660
    %v1662 = vmul.f32 %v1651, 1.442695
    %v1663 = vpow.pop %v1662
    %v1664 = vmul.f32 %v1652, 1.442695
    %v1665 = vpow.pop %v1664
    %v1666 = vmul.f32 %v1653, 1.442695
    %v1667 = vpow.pop %v1666
    %v1668 = vmul.f32 %v1654, 1.442695
    %v1669 = vpow.pop %v1668
    %v1670 = vmul.f32 %v1655, 1.442695
    %v1671 = vpow.pop %v1670
    %v1672 = vadd.f32 %v1657, 1.0
    %v1673 = vadd.f32 %v1659, 1.0
    %v1674 = vadd.f32 %v1661, 1.0
    %v1675 = vadd.f32 %v1663, 1.0
    %v1676 = vadd.f32 %v1665, 1.0
    %v1677 = vadd.f32 %v1667, 1.0
    %v1678 = vadd.f32 %v1669, 1.0
    %v1679 = vadd.f32 %v1671, 1.0
    %v1680 = vrcp.pop %v1672
    %v1681 = vmul.f32 1.0, %v1680
    %v1682 = vrcp.pop %v1673
    %v1683 = vmul.f32 1.0, %v1682
    %v1684 = vrcp.pop %v1674
    %v1685 = vmul.f32 1.0, %v1684
    %v1686 = vrcp.pop %v1675
    %v1687 = vmul.f32 1.0, %v1686
    %v1688 = vrcp.pop %v1676
    %v1689 = vmul.f32 1.0, %v1688
    %v1690 = vrcp.pop %v1677
    %v1691 = vmul.f32 1.0, %v1690
    %v1692 = vrcp.pop %v1678
    %v1693 = vmul.f32 1.0, %v1692
    %v1694 = vrcp.pop %v1679
    %v1695 = vmul.f32 1.0, %v1694
    %v1696 = vtanh.pop %v1640
    %v1697 = vtanh.pop %v1641
    %v1698 = vtanh.pop %v1642
    %v1699 = vtanh.pop %v1643
    %v1700 = vtanh.pop %v1644
    %v1701 = vtanh.pop %v1645
    %v1702 = vtanh.pop %v1646
    %v1703 = vtanh.pop %v1647
    %v1712 = vrot.slane %v1472, 7
    %v1713 = vrot.slane %v1473, 7
    %v1714 = vrot.slane %v1474, 7
    %v1715 = vrot.slane %v1475, 7
    %v1716 = vrot.slane %v1476, 7
    %v1717 = vrot.slane %v1477, 7
    %v1718 = vrot.slane %v1478, 7
    %v1719 = vrot.slane %v1479, 7
    %v1728 = vmul.f32 %v1681, %v1712
    %v1729 = vmul.f32 %v1683, %v1713
    %v1730 = vmul.f32 %v1685, %v1714
    %v1731 = vmul.f32 %v1687, %v1715
    %v1732 = vmul.f32 %v1689, %v1716
    %v1733 = vmul.f32 %v1691, %v1717
    %v1734 = vmul.f32 %v1693, %v1718
    %v1735 = vmul.f32 %v1695, %v1719
    %1744 = vrot.lane.b32.xlu0 %v1696, 32
    %v1745 = vpop.permute.xlu0 %1744
    %1746 = vrot.lane.b32.xlu0 %v1697, 32
    %v1747 = vpop.permute.xlu0 %1746
    %1748 = vrot.lane.b32.xlu0 %v1698, 32
    %v1749 = vpop.permute.xlu0 %1748
    %1750 = vrot.lane.b32.xlu0 %v1699, 32
    %v1751 = vpop.permute.xlu0 %1750
    %1752 = vrot.lane.b32.xlu0 %v1700, 32
    %v1753 = vpop.permute.xlu0 %1752
    %1754 = vrot.lane.b32.xlu0 %v1701, 32
    %v1755 = vpop.permute.xlu0 %1754
    %1756 = vrot.lane.b32.xlu0 %v1702, 32
    %v1757 = vpop.permute.xlu0 %1756
    %1758 = vrot.lane.b32.xlu0 %v1703, 32
    %v1759 = vpop.permute.xlu0 %1758
    %v1768 = vmul.f32 %v1681, %v1745
    %v1769 = vmul.f32 %v1683, %v1747
    %v1770 = vmul.f32 %v1685, %v1749
    %v1771 = vmul.f32 %v1687, %v1751
    %v1772 = vmul.f32 %v1689, %v1753
    %v1773 = vmul.f32 %v1691, %v1755
    %v1774 = vmul.f32 %v1693, %v1757
    %v1775 = vmul.f32 %v1695, %v1759
    %1784 = vrot.lane.b32.xlu0 %v1768, 32
    %v1785 = vpop.permute.xlu0 %1784
    %1786 = vrot.lane.b32.xlu0 %v1769, 32
    %v1787 = vpop.permute.xlu0 %1786
    %1788 = vrot.lane.b32.xlu0 %v1770, 32
    %v1789 = vpop.permute.xlu0 %1788
    %1790 = vrot.lane.b32.xlu0 %v1771, 32
    %v1791 = vpop.permute.xlu0 %1790
    %1792 = vrot.lane.b32.xlu0 %v1772, 32
    %v1793 = vpop.permute.xlu0 %1792
    %1794 = vrot.lane.b32.xlu0 %v1773, 32
    %v1795 = vpop.permute.xlu0 %1794
    %1796 = vrot.lane.b32.xlu0 %v1774, 32
    %v1797 = vpop.permute.xlu0 %1796
    %1798 = vrot.lane.b32.xlu0 %v1775, 32
    %v1799 = vpop.permute.xlu0 %1798
    %v1808 = vadd.f32 %v1728, %v1785
    %v1809 = vadd.f32 %v1729, %v1787
    %v1810 = vadd.f32 %v1730, %v1789
    %v1811 = vadd.f32 %v1731, %v1791
    %v1812 = vadd.f32 %v1732, %v1793
    %v1813 = vadd.f32 %v1733, %v1795
    %v1814 = vadd.f32 %v1734, %v1797
    %v1815 = vadd.f32 %v1735, %v1799
    %v1816 = vtanh.pop %v1808
    %v1817 = vtanh.pop %v1809
    %v1818 = vtanh.pop %v1810
    %v1819 = vtanh.pop %v1811
    %v1820 = vtanh.pop %v1812
    %v1821 = vtanh.pop %v1813
    %v1822 = vtanh.pop %v1814
    %v1823 = vtanh.pop %v1815
    %1832 = vrot.lane.b32.xlu0 %v1816, 32
    %v1833 = vpop.permute.xlu0 %1832
    %1834 = vrot.lane.b32.xlu0 %v1817, 32
    %v1835 = vpop.permute.xlu0 %1834
    %1836 = vrot.lane.b32.xlu0 %v1818, 32
    %v1837 = vpop.permute.xlu0 %1836
    %1838 = vrot.lane.b32.xlu0 %v1819, 32
    %v1839 = vpop.permute.xlu0 %1838
    %1840 = vrot.lane.b32.xlu0 %v1820, 32
    %v1841 = vpop.permute.xlu0 %1840
    %1842 = vrot.lane.b32.xlu0 %v1821, 32
    %v1843 = vpop.permute.xlu0 %1842
    %1844 = vrot.lane.b32.xlu0 %v1822, 32
    %v1845 = vpop.permute.xlu0 %1844
    %1846 = vrot.lane.b32.xlu0 %v1823, 32
    %v1847 = vpop.permute.xlu0 %1846
    %v1856 = vmul.f32 %v1681, %v1833
    %v1857 = vmul.f32 %v1683, %v1835
    %v1858 = vmul.f32 %v1685, %v1837
    %v1859 = vmul.f32 %v1687, %v1839
    %v1860 = vmul.f32 %v1689, %v1841
    %v1861 = vmul.f32 %v1691, %v1843
    %v1862 = vmul.f32 %v1693, %v1845
    %v1863 = vmul.f32 %v1695, %v1847
    %v1872 = vrot.slane %v1856, 4
    %v1873 = vrot.slane %v1857, 3
    %v1874 = vsel %vm522, %v1873, %v1872
    %v1875 = vrot.slane %v1858, 2
    %v1876 = vsel %vm525, %v1875, %v1874
    %v1877 = vrot.slane %v1859, 1
    %v1878 = vsel %vm528, %v1877, %v1876
    %v1879 = vsel %vm531, %v1860, %v1878
    %v1880 = vrot.slane %v1861, 7
    %v1881 = vsel %vm534, %v1880, %v1879
    %v1882 = vrot.slane %v1862, 6
    %v1883 = vsel %vm537, %v1882, %v1881
    %v1884 = vrot.slane %v1863, 5
    %v1885 = vsel %vm540, %v1884, %v1883
    %1886 = vrot.lane.b32.xlu0 %v1885, 64
    %v1887 = vpop.permute.xlu0 %1886
    %v1888 = vsel %vm223, %v1887, 0
    %1890 = vmatprep.subr.mxu0 0.0
    %1891 = vmatpush1.msra.mxu0 %v219
    %1892 = vmatprep.subr.mxu0 0.0
    %1893 = vmatpush1.msra.mxu0 %v220
    %1894 = vmatprep.subr.mxu0 0.0
    %1895 = vmatpush1.msra.mxu0 %v221
    %1896 = vmatprep.subr.mxu0 0.0
    %1897 = vmatpush1.msra.mxu0 %v222
    %1898 = vmatprep.subr.mxu0 0.0
    %1899 = vmatpush1.msra.mxu0 0.0
    %1900 = vmatprep.subr.mxu0 0.0
    %1901 = vmatpush1.msra.mxu0 0.0
    %1902 = vmatprep.subr.mxu0 0.0
    %1903 = vmatpush1.msra.mxu0 0.0
    %1904 = vmatprep.subr.mxu0 0.0
    %1905 = vmatpush1.msra.mxu0 0.0
    %1906 = vmatprep.subr.mxu0 0.0
    %1907 = vmatpush1.msra.mxu0 0.0
    %1908 = vmatprep.subr.mxu0 0.0
    %1909 = vmatpush1.msra.mxu0 0.0
    %1910 = vmatprep.subr.mxu0 0.0
    %1911 = vmatpush1.msra.mxu0 0.0
    %1912 = vmatprep.subr.mxu0 0.0
    %1913 = vmatpush1.msra.mxu0 0.0
    %1914 = vmatprep.subr.mxu0 0.0
    %1915 = vmatpush1.msra.mxu0 0.0
    %1916 = vmatprep.subr.mxu0 0.0
    %1917 = vmatpush1.msra.mxu0 0.0
    %1918 = vmatprep.subr.mxu0 0.0
    %1919 = vmatpush1.msra.mxu0 0.0
    %1920 = vmatprep.subr.mxu0 0.0
    %1921 = vmatpush1.msra.mxu0 0.0
    %1922 = vmatprep.subr.mxu0 0.0
    %1923 = vmatpush1.msra.mxu0 0.0
    %1924 = vmatprep.subr.mxu0 0.0
    %1925 = vmatpush1.msra.mxu0 0.0
    %1926 = vmatprep.subr.mxu0 0.0
    %1927 = vmatpush1.msra.mxu0 0.0
    %1928 = vmatprep.subr.mxu0 0.0
    %1929 = vmatpush1.msra.mxu0 0.0
    %1930 = vmatprep.subr.mxu0 0.0
    %1931 = vmatpush1.msra.mxu0 0.0
    %1932 = vmatprep.subr.mxu0 0.0
    %1933 = vmatpush1.msra.mxu0 0.0
    %1934 = vmatprep.subr.mxu0 0.0
    %1935 = vmatpush1.msra.mxu0 0.0
    %1936 = vmatprep.subr.mxu0 0.0
    %1937 = vmatpush1.msra.mxu0 0.0
    %1938 = vmatprep.subr.mxu0 0.0
    %1939 = vmatpush1.msra.mxu0 0.0
    %1940 = vmatprep.subr.mxu0 0.0
    %1941 = vmatpush1.msra.mxu0 0.0
    %1942 = vmatprep.subr.mxu0 0.0
    %1943 = vmatpush1.msra.mxu0 0.0
    %1944 = vmatprep.subr.mxu0 0.0
    %1945 = vmatpush1.msra.mxu0 0.0
    %1946 = vmatprep.subr.mxu0 0.0
    %1947 = vmatpush1.msra.mxu0 0.0
    %1948 = vmatprep.subr.mxu0 0.0
    %1949 = vmatpush1.msra.mxu0 0.0
    %1950 = vmatprep.subr.mxu0 0.0
    %1951 = vmatpush1.msra.mxu0 0.0
    %1952 = vmatprep.subr.mxu0 0.0
    %1953 = vmatpush1.msra.mxu0 0.0
    %1954 = vmatprep.mubr.f32.mxu0 0.0
    %1955 = vmatmul.mubr.f32.gmra.mrb[0].mxu0 %v1888
    %v1956 = vpop.f32.mrb[0].mxu0
    %v1957 = vadd.f32 0.0, %v1956
    %v1958 = vpop.f32.mrb[0].mxu0
    %1959 = vdwg.mxu0
    %v1961 = vrot.slane %v1957, 3
    %v1962 = vrot.slane %v1957, 4
    %v1963 = vrot.slane %v1957, 5
    %v1964 = vrot.slane %v1957, 6
    %v1965 = vrot.slane %v1957, 7
    %v1966 = vrot.slane %v1957, 1
    %v1967 = vrot.slane %v1957, 2
    %v1976 = vadd.f32 %v181, %v1961
    %v1977 = vadd.f32 %v186, %v1962
    %v1978 = vadd.f32 %v191, %v1963
    %v1979 = vadd.f32 %v196, %v1964
    %v1980 = vadd.f32 %v201, %v1965
    %v1981 = vadd.f32 %v206, %v1957
    %v1982 = vadd.f32 %v211, %v1966
    %v1983 = vadd.f32 %v216, %v1967
    %v1984 = vxor.u32 %v1976, 2147483648
    %v1985 = vxor.u32 %v1977, 2147483648
    %v1986 = vxor.u32 %v1978, 2147483648
    %v1987 = vxor.u32 %v1979, 2147483648
    %v1988 = vxor.u32 %v1980, 2147483648
    %v1989 = vxor.u32 %v1981, 2147483648
    %v1990 = vxor.u32 %v1982, 2147483648
    %v1991 = vxor.u32 %v1983, 2147483648
    %v1992 = vmul.f32 %v1984, 1.442695
    %v1993 = vpow.pop %v1992
    %v1994 = vmul.f32 %v1985, 1.442695
    %v1995 = vpow.pop %v1994
    %v1996 = vmul.f32 %v1986, 1.442695
    %v1997 = vpow.pop %v1996
    %v1998 = vmul.f32 %v1987, 1.442695
    %v1999 = vpow.pop %v1998
    %v2000 = vmul.f32 %v1988, 1.442695
    %v2001 = vpow.pop %v2000
    %v2002 = vmul.f32 %v1989, 1.442695
    %v2003 = vpow.pop %v2002
    %v2004 = vmul.f32 %v1990, 1.442695
    %v2005 = vpow.pop %v2004
    %v2006 = vmul.f32 %v1991, 1.442695
    %v2007 = vpow.pop %v2006
    %v2008 = vadd.f32 %v1993, 1.0
    %v2009 = vadd.f32 %v1995, 1.0
    %v2010 = vadd.f32 %v1997, 1.0
    %v2011 = vadd.f32 %v1999, 1.0
    %v2012 = vadd.f32 %v2001, 1.0
    %v2013 = vadd.f32 %v2003, 1.0
    %v2014 = vadd.f32 %v2005, 1.0
    %v2015 = vadd.f32 %v2007, 1.0
    %v2016 = vrcp.pop %v2008
    %v2017 = vmul.f32 1.0, %v2016
    %v2018 = vrcp.pop %v2009
    %v2019 = vmul.f32 1.0, %v2018
    %v2020 = vrcp.pop %v2010
    %v2021 = vmul.f32 1.0, %v2020
    %v2022 = vrcp.pop %v2011
    %v2023 = vmul.f32 1.0, %v2022
    %v2024 = vrcp.pop %v2012
    %v2025 = vmul.f32 1.0, %v2024
    %v2026 = vrcp.pop %v2013
    %v2027 = vmul.f32 1.0, %v2026
    %v2028 = vrcp.pop %v2014
    %v2029 = vmul.f32 1.0, %v2028
    %v2030 = vrcp.pop %v2015
    %v2031 = vmul.f32 1.0, %v2030
    %v2032 = vtanh.pop %v1976
    %v2033 = vtanh.pop %v1977
    %v2034 = vtanh.pop %v1978
    %v2035 = vtanh.pop %v1979
    %v2036 = vtanh.pop %v1980
    %v2037 = vtanh.pop %v1981
    %v2038 = vtanh.pop %v1982
    %v2039 = vtanh.pop %v1983
    %v2048 = vrot.slane %v1808, 7
    %v2049 = vrot.slane %v1809, 7
    %v2050 = vrot.slane %v1810, 7
    %v2051 = vrot.slane %v1811, 7
    %v2052 = vrot.slane %v1812, 7
    %v2053 = vrot.slane %v1813, 7
    %v2054 = vrot.slane %v1814, 7
    %v2055 = vrot.slane %v1815, 7
    %v2064 = vmul.f32 %v2017, %v2048
    %v2065 = vmul.f32 %v2019, %v2049
    %v2066 = vmul.f32 %v2021, %v2050
    %v2067 = vmul.f32 %v2023, %v2051
    %v2068 = vmul.f32 %v2025, %v2052
    %v2069 = vmul.f32 %v2027, %v2053
    %v2070 = vmul.f32 %v2029, %v2054
    %v2071 = vmul.f32 %v2031, %v2055
    %2080 = vrot.lane.b32.xlu0 %v2032, 32
    %v2081 = vpop.permute.xlu0 %2080
    %2082 = vrot.lane.b32.xlu0 %v2033, 32
    %v2083 = vpop.permute.xlu0 %2082
    %2084 = vrot.lane.b32.xlu0 %v2034, 32
    %v2085 = vpop.permute.xlu0 %2084
    %2086 = vrot.lane.b32.xlu0 %v2035, 32
    %v2087 = vpop.permute.xlu0 %2086
    %2088 = vrot.lane.b32.xlu0 %v2036, 32
    %v2089 = vpop.permute.xlu0 %2088
    %2090 = vrot.lane.b32.xlu0 %v2037, 32
    %v2091 = vpop.permute.xlu0 %2090
    %2092 = vrot.lane.b32.xlu0 %v2038, 32
    %v2093 = vpop.permute.xlu0 %2092
    %2094 = vrot.lane.b32.xlu0 %v2039, 32
    %v2095 = vpop.permute.xlu0 %2094
    %v2104 = vmul.f32 %v2017, %v2081
    %v2105 = vmul.f32 %v2019, %v2083
    %v2106 = vmul.f32 %v2021, %v2085
    %v2107 = vmul.f32 %v2023, %v2087
    %v2108 = vmul.f32 %v2025, %v2089
    %v2109 = vmul.f32 %v2027, %v2091
    %v2110 = vmul.f32 %v2029, %v2093
    %v2111 = vmul.f32 %v2031, %v2095
    %2120 = vrot.lane.b32.xlu0 %v2104, 32
    %v2121 = vpop.permute.xlu0 %2120
    %2122 = vrot.lane.b32.xlu0 %v2105, 32
    %v2123 = vpop.permute.xlu0 %2122
    %2124 = vrot.lane.b32.xlu0 %v2106, 32
    %v2125 = vpop.permute.xlu0 %2124
    %2126 = vrot.lane.b32.xlu0 %v2107, 32
    %v2127 = vpop.permute.xlu0 %2126
    %2128 = vrot.lane.b32.xlu0 %v2108, 32
    %v2129 = vpop.permute.xlu0 %2128
    %2130 = vrot.lane.b32.xlu0 %v2109, 32
    %v2131 = vpop.permute.xlu0 %2130
    %2132 = vrot.lane.b32.xlu0 %v2110, 32
    %v2133 = vpop.permute.xlu0 %2132
    %2134 = vrot.lane.b32.xlu0 %v2111, 32
    %v2135 = vpop.permute.xlu0 %2134
    %v2144 = vadd.f32 %v2064, %v2121
    %v2145 = vadd.f32 %v2065, %v2123
    %v2146 = vadd.f32 %v2066, %v2125
    %v2147 = vadd.f32 %v2067, %v2127
    %v2148 = vadd.f32 %v2068, %v2129
    %v2149 = vadd.f32 %v2069, %v2131
    %v2150 = vadd.f32 %v2070, %v2133
    %v2151 = vadd.f32 %v2071, %v2135
    %v2152 = vtanh.pop %v2144
    %v2153 = vtanh.pop %v2145
    %v2154 = vtanh.pop %v2146
    %v2155 = vtanh.pop %v2147
    %v2156 = vtanh.pop %v2148
    %v2157 = vtanh.pop %v2149
    %v2158 = vtanh.pop %v2150
    %v2159 = vtanh.pop %v2151
    %2168 = vrot.lane.b32.xlu0 %v2152, 32
    %v2169 = vpop.permute.xlu0 %2168
    %2170 = vrot.lane.b32.xlu0 %v2153, 32
    %v2171 = vpop.permute.xlu0 %2170
    %2172 = vrot.lane.b32.xlu0 %v2154, 32
    %v2173 = vpop.permute.xlu0 %2172
    %2174 = vrot.lane.b32.xlu0 %v2155, 32
    %v2175 = vpop.permute.xlu0 %2174
    %2176 = vrot.lane.b32.xlu0 %v2156, 32
    %v2177 = vpop.permute.xlu0 %2176
    %2178 = vrot.lane.b32.xlu0 %v2157, 32
    %v2179 = vpop.permute.xlu0 %2178
    %2180 = vrot.lane.b32.xlu0 %v2158, 32
    %v2181 = vpop.permute.xlu0 %2180
    %2182 = vrot.lane.b32.xlu0 %v2159, 32
    %v2183 = vpop.permute.xlu0 %2182
    %v2192 = vmul.f32 %v2017, %v2169
    %v2193 = vmul.f32 %v2019, %v2171
    %v2194 = vmul.f32 %v2021, %v2173
    %v2195 = vmul.f32 %v2023, %v2175
    %v2196 = vmul.f32 %v2025, %v2177
    %v2197 = vmul.f32 %v2027, %v2179
    %v2198 = vmul.f32 %v2029, %v2181
    %v2199 = vmul.f32 %v2031, %v2183
    %v2208 = vrot.slane %v2192, 5
    %v2209 = vrot.slane %v2193, 4
    %v2210 = vsel %vm522, %v2209, %v2208
    %v2211 = vrot.slane %v2194, 3
    %v2212 = vsel %vm525, %v2211, %v2210
    %v2213 = vrot.slane %v2195, 2
    %v2214 = vsel %vm528, %v2213, %v2212
    %v2215 = vrot.slane %v2196, 1
    %v2216 = vsel %vm531, %v2215, %v2214
    %v2217 = vsel %vm534, %v2197, %v2216
    %v2218 = vrot.slane %v2198, 7
    %v2219 = vsel %vm537, %v2218, %v2217
    %v2220 = vrot.slane %v2199, 6
    %v2221 = vsel %vm540, %v2220, %v2219
    %2222 = vrot.lane.b32.xlu0 %v2221, 64
    %v2223 = vpop.permute.xlu0 %2222
    %v2224 = vsel %vm223, %v2223, 0
    %2226 = vmatprep.subr.mxu0 0.0
    %2227 = vmatpush1.msra.mxu0 %v219
    %2228 = vmatprep.subr.mxu0 0.0
    %2229 = vmatpush1.msra.mxu0 %v220
    %2230 = vmatprep.subr.mxu0 0.0
    %2231 = vmatpush1.msra.mxu0 %v221
    %2232 = vmatprep.subr.mxu0 0.0
    %2233 = vmatpush1.msra.mxu0 %v222
    %2234 = vmatprep.subr.mxu0 0.0
    %2235 = vmatpush1.msra.mxu0 0.0
    %2236 = vmatprep.subr.mxu0 0.0
    %2237 = vmatpush1.msra.mxu0 0.0
    %2238 = vmatprep.subr.mxu0 0.0
    %2239 = vmatpush1.msra.mxu0 0.0
    %2240 = vmatprep.subr.mxu0 0.0
    %2241 = vmatpush1.msra.mxu0 0.0
    %2242 = vmatprep.subr.mxu0 0.0
    %2243 = vmatpush1.msra.mxu0 0.0
    %2244 = vmatprep.subr.mxu0 0.0
    %2245 = vmatpush1.msra.mxu0 0.0
    %2246 = vmatprep.subr.mxu0 0.0
    %2247 = vmatpush1.msra.mxu0 0.0
    %2248 = vmatprep.subr.mxu0 0.0
    %2249 = vmatpush1.msra.mxu0 0.0
    %2250 = vmatprep.subr.mxu0 0.0
    %2251 = vmatpush1.msra.mxu0 0.0
    %2252 = vmatprep.subr.mxu0 0.0
    %2253 = vmatpush1.msra.mxu0 0.0
    %2254 = vmatprep.subr.mxu0 0.0
    %2255 = vmatpush1.msra.mxu0 0.0
    %2256 = vmatprep.subr.mxu0 0.0
    %2257 = vmatpush1.msra.mxu0 0.0
    %2258 = vmatprep.subr.mxu0 0.0
    %2259 = vmatpush1.msra.mxu0 0.0
    %2260 = vmatprep.subr.mxu0 0.0
    %2261 = vmatpush1.msra.mxu0 0.0
    %2262 = vmatprep.subr.mxu0 0.0
    %2263 = vmatpush1.msra.mxu0 0.0
    %2264 = vmatprep.subr.mxu0 0.0
    %2265 = vmatpush1.msra.mxu0 0.0
    %2266 = vmatprep.subr.mxu0 0.0
    %2267 = vmatpush1.msra.mxu0 0.0
    %2268 = vmatprep.subr.mxu0 0.0
    %2269 = vmatpush1.msra.mxu0 0.0
    %2270 = vmatprep.subr.mxu0 0.0
    %2271 = vmatpush1.msra.mxu0 0.0
    %2272 = vmatprep.subr.mxu0 0.0
    %2273 = vmatpush1.msra.mxu0 0.0
    %2274 = vmatprep.subr.mxu0 0.0
    %2275 = vmatpush1.msra.mxu0 0.0
    %2276 = vmatprep.subr.mxu0 0.0
    %2277 = vmatpush1.msra.mxu0 0.0
    %2278 = vmatprep.subr.mxu0 0.0
    %2279 = vmatpush1.msra.mxu0 0.0
    %2280 = vmatprep.subr.mxu0 0.0
    %2281 = vmatpush1.msra.mxu0 0.0
    %2282 = vmatprep.subr.mxu0 0.0
    %2283 = vmatpush1.msra.mxu0 0.0
    %2284 = vmatprep.subr.mxu0 0.0
    %2285 = vmatpush1.msra.mxu0 0.0
    %2286 = vmatprep.subr.mxu0 0.0
    %2287 = vmatpush1.msra.mxu0 0.0
    %2288 = vmatprep.subr.mxu0 0.0
    %2289 = vmatpush1.msra.mxu0 0.0
    %2290 = vmatprep.mubr.f32.mxu0 0.0
    %2291 = vmatmul.mubr.f32.gmra.mrb[0].mxu0 %v2224
    %v2292 = vpop.f32.mrb[0].mxu0
    %v2293 = vadd.f32 0.0, %v2292
    %v2294 = vpop.f32.mrb[0].mxu0
    %2295 = vdwg.mxu0
    %v2297 = vrot.slane %v2293, 2
    %v2298 = vrot.slane %v2293, 3
    %v2299 = vrot.slane %v2293, 4
    %v2300 = vrot.slane %v2293, 5
    %v2301 = vrot.slane %v2293, 6
    %v2302 = vrot.slane %v2293, 7
    %v2303 = vrot.slane %v2293, 1
    %v2312 = vadd.f32 %v181, %v2297
    %v2313 = vadd.f32 %v186, %v2298
    %v2314 = vadd.f32 %v191, %v2299
    %v2315 = vadd.f32 %v196, %v2300
    %v2316 = vadd.f32 %v201, %v2301
    %v2317 = vadd.f32 %v206, %v2302
    %v2318 = vadd.f32 %v211, %v2293
    %v2319 = vadd.f32 %v216, %v2303
    %v2320 = vxor.u32 %v2312, 2147483648
    %v2321 = vxor.u32 %v2313, 2147483648
    %v2322 = vxor.u32 %v2314, 2147483648
    %v2323 = vxor.u32 %v2315, 2147483648
    %v2324 = vxor.u32 %v2316, 2147483648
    %v2325 = vxor.u32 %v2317, 2147483648
    %v2326 = vxor.u32 %v2318, 2147483648
    %v2327 = vxor.u32 %v2319, 2147483648
    %v2328 = vmul.f32 %v2320, 1.442695
    %v2329 = vpow.pop %v2328
    %v2330 = vmul.f32 %v2321, 1.442695
    %v2331 = vpow.pop %v2330
    %v2332 = vmul.f32 %v2322, 1.442695
    %v2333 = vpow.pop %v2332
    %v2334 = vmul.f32 %v2323, 1.442695
    %v2335 = vpow.pop %v2334
    %v2336 = vmul.f32 %v2324, 1.442695
    %v2337 = vpow.pop %v2336
    %v2338 = vmul.f32 %v2325, 1.442695
    %v2339 = vpow.pop %v2338
    %v2340 = vmul.f32 %v2326, 1.442695
    %v2341 = vpow.pop %v2340
    %v2342 = vmul.f32 %v2327, 1.442695
    %v2343 = vpow.pop %v2342
    %v2344 = vadd.f32 %v2329, 1.0
    %v2345 = vadd.f32 %v2331, 1.0
    %v2346 = vadd.f32 %v2333, 1.0
    %v2347 = vadd.f32 %v2335, 1.0
    %v2348 = vadd.f32 %v2337, 1.0
    %v2349 = vadd.f32 %v2339, 1.0
    %v2350 = vadd.f32 %v2341, 1.0
    %v2351 = vadd.f32 %v2343, 1.0
    %v2352 = vrcp.pop %v2344
    %v2353 = vmul.f32 1.0, %v2352
    %v2354 = vrcp.pop %v2345
    %v2355 = vmul.f32 1.0, %v2354
    %v2356 = vrcp.pop %v2346
    %v2357 = vmul.f32 1.0, %v2356
    %v2358 = vrcp.pop %v2347
    %v2359 = vmul.f32 1.0, %v2358
    %v2360 = vrcp.pop %v2348
    %v2361 = vmul.f32 1.0, %v2360
    %v2362 = vrcp.pop %v2349
    %v2363 = vmul.f32 1.0, %v2362
    %v2364 = vrcp.pop %v2350
    %v2365 = vmul.f32 1.0, %v2364
    %v2366 = vrcp.pop %v2351
    %v2367 = vmul.f32 1.0, %v2366
    %v2368 = vtanh.pop %v2312
    %v2369 = vtanh.pop %v2313
    %v2370 = vtanh.pop %v2314
    %v2371 = vtanh.pop %v2315
    %v2372 = vtanh.pop %v2316
    %v2373 = vtanh.pop %v2317
    %v2374 = vtanh.pop %v2318
    %v2375 = vtanh.pop %v2319
    %v2384 = vrot.slane %v2144, 7
    %v2385 = vrot.slane %v2145, 7
    %v2386 = vrot.slane %v2146, 7
    %v2387 = vrot.slane %v2147, 7
    %v2388 = vrot.slane %v2148, 7
    %v2389 = vrot.slane %v2149, 7
    %v2390 = vrot.slane %v2150, 7
    %v2391 = vrot.slane %v2151, 7
    %v2400 = vmul.f32 %v2353, %v2384
    %v2401 = vmul.f32 %v2355, %v2385
    %v2402 = vmul.f32 %v2357, %v2386
    %v2403 = vmul.f32 %v2359, %v2387
    %v2404 = vmul.f32 %v2361, %v2388
    %v2405 = vmul.f32 %v2363, %v2389
    %v2406 = vmul.f32 %v2365, %v2390
    %v2407 = vmul.f32 %v2367, %v2391
    %2416 = vrot.lane.b32.xlu0 %v2368, 32
    %v2417 = vpop.permute.xlu0 %2416
    %2418 = vrot.lane.b32.xlu0 %v2369, 32
    %v2419 = vpop.permute.xlu0 %2418
    %2420 = vrot.lane.b32.xlu0 %v2370, 32
    %v2421 = vpop.permute.xlu0 %2420
    %2422 = vrot.lane.b32.xlu0 %v2371, 32
    %v2423 = vpop.permute.xlu0 %2422
    %2424 = vrot.lane.b32.xlu0 %v2372, 32
    %v2425 = vpop.permute.xlu0 %2424
    %2426 = vrot.lane.b32.xlu0 %v2373, 32
    %v2427 = vpop.permute.xlu0 %2426
    %2428 = vrot.lane.b32.xlu0 %v2374, 32
    %v2429 = vpop.permute.xlu0 %2428
    %2430 = vrot.lane.b32.xlu0 %v2375, 32
    %v2431 = vpop.permute.xlu0 %2430
    %v2440 = vmul.f32 %v2353, %v2417
    %v2441 = vmul.f32 %v2355, %v2419
    %v2442 = vmul.f32 %v2357, %v2421
    %v2443 = vmul.f32 %v2359, %v2423
    %v2444 = vmul.f32 %v2361, %v2425
    %v2445 = vmul.f32 %v2363, %v2427
    %v2446 = vmul.f32 %v2365, %v2429
    %v2447 = vmul.f32 %v2367, %v2431
    %2456 = vrot.lane.b32.xlu0 %v2440, 32
    %v2457 = vpop.permute.xlu0 %2456
    %2458 = vrot.lane.b32.xlu0 %v2441, 32
    %v2459 = vpop.permute.xlu0 %2458
    %2460 = vrot.lane.b32.xlu0 %v2442, 32
    %v2461 = vpop.permute.xlu0 %2460
    %2462 = vrot.lane.b32.xlu0 %v2443, 32
    %v2463 = vpop.permute.xlu0 %2462
    %2464 = vrot.lane.b32.xlu0 %v2444, 32
    %v2465 = vpop.permute.xlu0 %2464
    %2466 = vrot.lane.b32.xlu0 %v2445, 32
    %v2467 = vpop.permute.xlu0 %2466
    %2468 = vrot.lane.b32.xlu0 %v2446, 32
    %v2469 = vpop.permute.xlu0 %2468
    %2470 = vrot.lane.b32.xlu0 %v2447, 32
    %v2471 = vpop.permute.xlu0 %2470
    %v2480 = vadd.f32 %v2400, %v2457
    %v2481 = vadd.f32 %v2401, %v2459
    %v2482 = vadd.f32 %v2402, %v2461
    %v2483 = vadd.f32 %v2403, %v2463
    %v2484 = vadd.f32 %v2404, %v2465
    %v2485 = vadd.f32 %v2405, %v2467
    %v2486 = vadd.f32 %v2406, %v2469
    %v2487 = vadd.f32 %v2407, %v2471
    %v2488 = vtanh.pop %v2480
    %v2489 = vtanh.pop %v2481
    %v2490 = vtanh.pop %v2482
    %v2491 = vtanh.pop %v2483
    %v2492 = vtanh.pop %v2484
    %v2493 = vtanh.pop %v2485
    %v2494 = vtanh.pop %v2486
    %v2495 = vtanh.pop %v2487
    %2504 = vrot.lane.b32.xlu0 %v2488, 32
    %v2505 = vpop.permute.xlu0 %2504
    %2506 = vrot.lane.b32.xlu0 %v2489, 32
    %v2507 = vpop.permute.xlu0 %2506
    %2508 = vrot.lane.b32.xlu0 %v2490, 32
    %v2509 = vpop.permute.xlu0 %2508
    %2510 = vrot.lane.b32.xlu0 %v2491, 32
    %v2511 = vpop.permute.xlu0 %2510
    %2512 = vrot.lane.b32.xlu0 %v2492, 32
    %v2513 = vpop.permute.xlu0 %2512
    %2514 = vrot.lane.b32.xlu0 %v2493, 32
    %v2515 = vpop.permute.xlu0 %2514
    %2516 = vrot.lane.b32.xlu0 %v2494, 32
    %v2517 = vpop.permute.xlu0 %2516
    %2518 = vrot.lane.b32.xlu0 %v2495, 32
    %v2519 = vpop.permute.xlu0 %2518
    %v2528 = vmul.f32 %v2353, %v2505
    %v2529 = vmul.f32 %v2355, %v2507
    %v2530 = vmul.f32 %v2357, %v2509
    %v2531 = vmul.f32 %v2359, %v2511
    %v2532 = vmul.f32 %v2361, %v2513
    %v2533 = vmul.f32 %v2363, %v2515
    %v2534 = vmul.f32 %v2365, %v2517
    %v2535 = vmul.f32 %v2367, %v2519
    %v2544 = vrot.slane %v2528, 6
    %v2545 = vrot.slane %v2529, 5
    %v2546 = vsel %vm522, %v2545, %v2544
    %v2547 = vrot.slane %v2530, 4
    %v2548 = vsel %vm525, %v2547, %v2546
    %v2549 = vrot.slane %v2531, 3
    %v2550 = vsel %vm528, %v2549, %v2548
    %v2551 = vrot.slane %v2532, 2
    %v2552 = vsel %vm531, %v2551, %v2550
    %v2553 = vrot.slane %v2533, 1
    %v2554 = vsel %vm534, %v2553, %v2552
    %v2555 = vsel %vm537, %v2534, %v2554
    %v2556 = vrot.slane %v2535, 7
    %v2557 = vsel %vm540, %v2556, %v2555
    %2558 = vrot.lane.b32.xlu0 %v2557, 64
    %v2559 = vpop.permute.xlu0 %2558
    %v2560 = vsel %vm223, %v2559, 0
    %2562 = vmatprep.subr.mxu0 0.0
    %2563 = vmatpush1.msra.mxu0 %v219
    %2564 = vmatprep.subr.mxu0 0.0
    %2565 = vmatpush1.msra.mxu0 %v220
    %2566 = vmatprep.subr.mxu0 0.0
    %2567 = vmatpush1.msra.mxu0 %v221
    %2568 = vmatprep.subr.mxu0 0.0
    %2569 = vmatpush1.msra.mxu0 %v222
    %2570 = vmatprep.subr.mxu0 0.0
    %2571 = vmatpush1.msra.mxu0 0.0
    %2572 = vmatprep.subr.mxu0 0.0
    %2573 = vmatpush1.msra.mxu0 0.0
    %2574 = vmatprep.subr.mxu0 0.0
    %2575 = vmatpush1.msra.mxu0 0.0
    %2576 = vmatprep.subr.mxu0 0.0
    %2577 = vmatpush1.msra.mxu0 0.0
    %2578 = vmatprep.subr.mxu0 0.0
    %2579 = vmatpush1.msra.mxu0 0.0
    %2580 = vmatprep.subr.mxu0 0.0
    %2581 = vmatpush1.msra.mxu0 0.0
    %2582 = vmatprep.subr.mxu0 0.0
    %2583 = vmatpush1.msra.mxu0 0.0
    %2584 = vmatprep.subr.mxu0 0.0
    %2585 = vmatpush1.msra.mxu0 0.0
    %2586 = vmatprep.subr.mxu0 0.0
    %2587 = vmatpush1.msra.mxu0 0.0
    %2588 = vmatprep.subr.mxu0 0.0
    %2589 = vmatpush1.msra.mxu0 0.0
    %2590 = vmatprep.subr.mxu0 0.0
    %2591 = vmatpush1.msra.mxu0 0.0
    %2592 = vmatprep.subr.mxu0 0.0
    %2593 = vmatpush1.msra.mxu0 0.0
    %2594 = vmatprep.subr.mxu0 0.0
    %2595 = vmatpush1.msra.mxu0 0.0
    %2596 = vmatprep.subr.mxu0 0.0
    %2597 = vmatpush1.msra.mxu0 0.0
    %2598 = vmatprep.subr.mxu0 0.0
    %2599 = vmatpush1.msra.mxu0 0.0
    %2600 = vmatprep.subr.mxu0 0.0
    %2601 = vmatpush1.msra.mxu0 0.0
    %2602 = vmatprep.subr.mxu0 0.0
    %2603 = vmatpush1.msra.mxu0 0.0
    %2604 = vmatprep.subr.mxu0 0.0
    %2605 = vmatpush1.msra.mxu0 0.0
    %2606 = vmatprep.subr.mxu0 0.0
    %2607 = vmatpush1.msra.mxu0 0.0
    %2608 = vmatprep.subr.mxu0 0.0
    %2609 = vmatpush1.msra.mxu0 0.0
    %2610 = vmatprep.subr.mxu0 0.0
    %2611 = vmatpush1.msra.mxu0 0.0
    %2612 = vmatprep.subr.mxu0 0.0
    %2613 = vmatpush1.msra.mxu0 0.0
    %2614 = vmatprep.subr.mxu0 0.0
    %2615 = vmatpush1.msra.mxu0 0.0
    %2616 = vmatprep.subr.mxu0 0.0
    %2617 = vmatpush1.msra.mxu0 0.0
    %2618 = vmatprep.subr.mxu0 0.0
    %2619 = vmatpush1.msra.mxu0 0.0
    %2620 = vmatprep.subr.mxu0 0.0
    %2621 = vmatpush1.msra.mxu0 0.0
    %2622 = vmatprep.subr.mxu0 0.0
    %2623 = vmatpush1.msra.mxu0 0.0
    %2624 = vmatprep.subr.mxu0 0.0
    %2625 = vmatpush1.msra.mxu0 0.0
    %2626 = vmatprep.mubr.f32.mxu0 0.0
    %2627 = vmatmul.mubr.f32.gmra.mrb[0].mxu0 %v2560
    %v2628 = vpop.f32.mrb[0].mxu0
    %v2629 = vadd.f32 0.0, %v2628
    %v2630 = vpop.f32.mrb[0].mxu0
    %2631 = vdwg.mxu0
    %v2633 = vrot.slane %v2629, 1
    %v2634 = vrot.slane %v2629, 2
    %v2635 = vrot.slane %v2629, 3
    %v2636 = vrot.slane %v2629, 4
    %v2637 = vrot.slane %v2629, 5
    %v2638 = vrot.slane %v2629, 6
    %v2639 = vrot.slane %v2629, 7
    %v2648 = vadd.f32 %v181, %v2633
    %v2649 = vadd.f32 %v186, %v2634
    %v2650 = vadd.f32 %v191, %v2635
    %v2651 = vadd.f32 %v196, %v2636
    %v2652 = vadd.f32 %v201, %v2637
    %v2653 = vadd.f32 %v206, %v2638
    %v2654 = vadd.f32 %v211, %v2639
    %v2655 = vadd.f32 %v216, %v2629
    %v2656 = vxor.u32 %v2648, 2147483648
    %v2657 = vxor.u32 %v2649, 2147483648
    %v2658 = vxor.u32 %v2650, 2147483648
    %v2659 = vxor.u32 %v2651, 2147483648
    %v2660 = vxor.u32 %v2652, 2147483648
    %v2661 = vxor.u32 %v2653, 2147483648
    %v2662 = vxor.u32 %v2654, 2147483648
    %v2663 = vxor.u32 %v2655, 2147483648
    %v2664 = vmul.f32 %v2656, 1.442695
    %v2665 = vpow.pop %v2664
    %v2666 = vmul.f32 %v2657, 1.442695
    %v2667 = vpow.pop %v2666
    %v2668 = vmul.f32 %v2658, 1.442695
    %v2669 = vpow.pop %v2668
    %v2670 = vmul.f32 %v2659, 1.442695
    %v2671 = vpow.pop %v2670
    %v2672 = vmul.f32 %v2660, 1.442695
    %v2673 = vpow.pop %v2672
    %v2674 = vmul.f32 %v2661, 1.442695
    %v2675 = vpow.pop %v2674
    %v2676 = vmul.f32 %v2662, 1.442695
    %v2677 = vpow.pop %v2676
    %v2678 = vmul.f32 %v2663, 1.442695
    %v2679 = vpow.pop %v2678
    %v2680 = vadd.f32 %v2665, 1.0
    %v2681 = vadd.f32 %v2667, 1.0
    %v2682 = vadd.f32 %v2669, 1.0
    %v2683 = vadd.f32 %v2671, 1.0
    %v2684 = vadd.f32 %v2673, 1.0
    %v2685 = vadd.f32 %v2675, 1.0
    %v2686 = vadd.f32 %v2677, 1.0
    %v2687 = vadd.f32 %v2679, 1.0
    %v2688 = vrcp.pop %v2680
    %v2689 = vmul.f32 1.0, %v2688
    %v2690 = vrcp.pop %v2681
    %v2691 = vmul.f32 1.0, %v2690
    %v2692 = vrcp.pop %v2682
    %v2693 = vmul.f32 1.0, %v2692
    %v2694 = vrcp.pop %v2683
    %v2695 = vmul.f32 1.0, %v2694
    %v2696 = vrcp.pop %v2684
    %v2697 = vmul.f32 1.0, %v2696
    %v2698 = vrcp.pop %v2685
    %v2699 = vmul.f32 1.0, %v2698
    %v2700 = vrcp.pop %v2686
    %v2701 = vmul.f32 1.0, %v2700
    %v2702 = vrcp.pop %v2687
    %v2703 = vmul.f32 1.0, %v2702
    %v2704 = vtanh.pop %v2648
    %v2705 = vtanh.pop %v2649
    %v2706 = vtanh.pop %v2650
    %v2707 = vtanh.pop %v2651
    %v2708 = vtanh.pop %v2652
    %v2709 = vtanh.pop %v2653
    %v2710 = vtanh.pop %v2654
    %v2711 = vtanh.pop %v2655
    %v2720 = vrot.slane %v2480, 7
    %v2721 = vrot.slane %v2481, 7
    %v2722 = vrot.slane %v2482, 7
    %v2723 = vrot.slane %v2483, 7
    %v2724 = vrot.slane %v2484, 7
    %v2725 = vrot.slane %v2485, 7
    %v2726 = vrot.slane %v2486, 7
    %v2727 = vrot.slane %v2487, 7
    %v2736 = vmul.f32 %v2689, %v2720
    %v2737 = vmul.f32 %v2691, %v2721
    %v2738 = vmul.f32 %v2693, %v2722
    %v2739 = vmul.f32 %v2695, %v2723
    %v2740 = vmul.f32 %v2697, %v2724
    %v2741 = vmul.f32 %v2699, %v2725
    %v2742 = vmul.f32 %v2701, %v2726
    %v2743 = vmul.f32 %v2703, %v2727
    %2752 = vrot.lane.b32.xlu0 %v2704, 32
    %v2753 = vpop.permute.xlu0 %2752
    %2754 = vrot.lane.b32.xlu0 %v2705, 32
    %v2755 = vpop.permute.xlu0 %2754
    %2756 = vrot.lane.b32.xlu0 %v2706, 32
    %v2757 = vpop.permute.xlu0 %2756
    %2758 = vrot.lane.b32.xlu0 %v2707, 32
    %v2759 = vpop.permute.xlu0 %2758
    %2760 = vrot.lane.b32.xlu0 %v2708, 32
    %v2761 = vpop.permute.xlu0 %2760
    %2762 = vrot.lane.b32.xlu0 %v2709, 32
    %v2763 = vpop.permute.xlu0 %2762
    %2764 = vrot.lane.b32.xlu0 %v2710, 32
    %v2765 = vpop.permute.xlu0 %2764
    %2766 = vrot.lane.b32.xlu0 %v2711, 32
    %v2767 = vpop.permute.xlu0 %2766
    %v2776 = vmul.f32 %v2689, %v2753
    %v2777 = vmul.f32 %v2691, %v2755
    %v2778 = vmul.f32 %v2693, %v2757
    %v2779 = vmul.f32 %v2695, %v2759
    %v2780 = vmul.f32 %v2697, %v2761
    %v2781 = vmul.f32 %v2699, %v2763
    %v2782 = vmul.f32 %v2701, %v2765
    %v2783 = vmul.f32 %v2703, %v2767
    %2792 = vrot.lane.b32.xlu0 %v2776, 32
    %v2793 = vpop.permute.xlu0 %2792
    %2794 = vrot.lane.b32.xlu0 %v2777, 32
    %v2795 = vpop.permute.xlu0 %2794
    %2796 = vrot.lane.b32.xlu0 %v2778, 32
    %v2797 = vpop.permute.xlu0 %2796
    %2798 = vrot.lane.b32.xlu0 %v2779, 32
    %v2799 = vpop.permute.xlu0 %2798
    %2800 = vrot.lane.b32.xlu0 %v2780, 32
    %v2801 = vpop.permute.xlu0 %2800
    %2802 = vrot.lane.b32.xlu0 %v2781, 32
    %v2803 = vpop.permute.xlu0 %2802
    %2804 = vrot.lane.b32.xlu0 %v2782, 32
    %v2805 = vpop.permute.xlu0 %2804
    %2806 = vrot.lane.b32.xlu0 %v2783, 32
    %v2807 = vpop.permute.xlu0 %2806
    %v2816 = vadd.f32 %v2736, %v2793
    %v2817 = vadd.f32 %v2737, %v2795
    %v2818 = vadd.f32 %v2738, %v2797
    %v2819 = vadd.f32 %v2739, %v2799
    %v2820 = vadd.f32 %v2740, %v2801
    %v2821 = vadd.f32 %v2741, %v2803
    %v2822 = vadd.f32 %v2742, %v2805
    %v2823 = vadd.f32 %v2743, %v2807
    %v2824 = vtanh.pop %v2816
    %v2825 = vtanh.pop %v2817
    %v2826 = vtanh.pop %v2818
    %v2827 = vtanh.pop %v2819
    %v2828 = vtanh.pop %v2820
    %v2829 = vtanh.pop %v2821
    %v2830 = vtanh.pop %v2822
    %v2831 = vtanh.pop %v2823
    %2840 = vrot.lane.b32.xlu0 %v2824, 32
    %v2841 = vpop.permute.xlu0 %2840
    %2842 = vrot.lane.b32.xlu0 %v2825, 32
    %v2843 = vpop.permute.xlu0 %2842
    %2844 = vrot.lane.b32.xlu0 %v2826, 32
    %v2845 = vpop.permute.xlu0 %2844
    %2846 = vrot.lane.b32.xlu0 %v2827, 32
    %v2847 = vpop.permute.xlu0 %2846
    %2848 = vrot.lane.b32.xlu0 %v2828, 32
    %v2849 = vpop.permute.xlu0 %2848
    %2850 = vrot.lane.b32.xlu0 %v2829, 32
    %v2851 = vpop.permute.xlu0 %2850
    %2852 = vrot.lane.b32.xlu0 %v2830, 32
    %v2853 = vpop.permute.xlu0 %2852
    %2854 = vrot.lane.b32.xlu0 %v2831, 32
    %v2855 = vpop.permute.xlu0 %2854
    %v2864 = vmul.f32 %v2689, %v2841
    %v2865 = vmul.f32 %v2691, %v2843
    %v2866 = vmul.f32 %v2693, %v2845
    %v2867 = vmul.f32 %v2695, %v2847
    %v2868 = vmul.f32 %v2697, %v2849
    %v2869 = vmul.f32 %v2699, %v2851
    %v2870 = vmul.f32 %v2701, %v2853
    %v2871 = vmul.f32 %v2703, %v2855
    %v2872 = vld [vmem:[%s4] sm:$0x1]
    %v2874 = vlaneseq
    %v2875 = vshrl.u32 %v2874, 7
    %v2876 = vsub.s32 0, %v2875
    %v2877 = vrot.slane %v2872, %v2876
    %2878 = vrot.lane.b32.xlu0 %v2877, 64
    %v2879 = vpop.permute.xlu0 %2878
    %v2881 = vmul.f32 %v2864, %v2879
    %v2882 = vmul.f32 %v2865, %v2879
    %v2883 = vmul.f32 %v2866, %v2879
    %v2884 = vmul.f32 %v2867, %v2879
    %v2885 = vmul.f32 %v2868, %v2879
    %v2886 = vmul.f32 %v2869, %v2879
    %v2887 = vmul.f32 %v2870, %v2879
    %v2888 = vmul.f32 %v2871, %v2879
    %v2889 = vld [vmem:[%s5] sm:$0x1]
    %v2891 = vlaneseq
    %v2892 = vshrl.u32 %v2891, 7
    %v2893 = vsub.s32 0, %v2892
    %v2894 = vrot.slane %v2889, %v2893
    %2895 = vrot.lane.b32.xlu0 %v2894, 32
    %v2896 = vpop.permute.xlu0 %2895
    %v2898 = vmul.f32 %v2816, %v2896
    %v2899 = vmul.f32 %v2817, %v2896
    %v2900 = vmul.f32 %v2818, %v2896
    %v2901 = vmul.f32 %v2819, %v2896
    %v2902 = vmul.f32 %v2820, %v2896
    %v2903 = vmul.f32 %v2821, %v2896
    %v2904 = vmul.f32 %v2822, %v2896
    %v2905 = vmul.f32 %v2823, %v2896
    %2914 = vrot.lane.b32.xlu0 %v2898, 32
    %v2915 = vpop.permute.xlu0 %2914
    %2916 = vrot.lane.b32.xlu0 %v2899, 32
    %v2917 = vpop.permute.xlu0 %2916
    %2918 = vrot.lane.b32.xlu0 %v2900, 32
    %v2919 = vpop.permute.xlu0 %2918
    %2920 = vrot.lane.b32.xlu0 %v2901, 32
    %v2921 = vpop.permute.xlu0 %2920
    %2922 = vrot.lane.b32.xlu0 %v2902, 32
    %v2923 = vpop.permute.xlu0 %2922
    %2924 = vrot.lane.b32.xlu0 %v2903, 32
    %v2925 = vpop.permute.xlu0 %2924
    %2926 = vrot.lane.b32.xlu0 %v2904, 32
    %v2927 = vpop.permute.xlu0 %2926
    %2928 = vrot.lane.b32.xlu0 %v2905, 32
    %v2929 = vpop.permute.xlu0 %2928
    %v2938 = vadd.f32 %v2881, %v2915
    %v2939 = vadd.f32 %v2882, %v2917
    %v2940 = vadd.f32 %v2883, %v2919
    %v2941 = vadd.f32 %v2884, %v2921
    %v2942 = vadd.f32 %v2885, %v2923
    %v2943 = vadd.f32 %v2886, %v2925
    %v2944 = vadd.f32 %v2887, %v2927
    %v2945 = vadd.f32 %v2888, %v2929
    %v2954 = vrot.slane %v2939, 7
    %v2955 = vrot.slane %v2940, 6
    %v2956 = vsel %vm522, %v2955, %v2954
    %v2957 = vrot.slane %v2941, 5
    %v2958 = vsel %vm525, %v2957, %v2956
    %v2959 = vrot.slane %v2942, 4
    %v2960 = vsel %vm528, %v2959, %v2958
    %v2961 = vrot.slane %v2943, 3
    %v2962 = vsel %vm531, %v2961, %v2960
    %v2963 = vrot.slane %v2944, 2
    %v2964 = vsel %vm534, %v2963, %v2962
    %v2965 = vrot.slane %v2945, 1
    %v2966 = vsel %vm537, %v2965, %v2964
    %2967 = vrot.lane.b32.xlu0 %v2938, 64
    %v2968 = vpop.permute.xlu0 %2967
    %2969 = vrot.lane.b32.xlu0 %v2966, 64
    %v2970 = vpop.permute.xlu0 %2969
    %vm2973 = vcmask 261127
    %v2974 = vsel %vm2973, %v2968, 0.0
    %2975 = vadd.xlane.f32.xlu0 %v2974
    %v2976 = vpop.xlane.xlu0 %2975
    %vm2977 = vcmask 260096
    %v2978 = vsel %vm2977, %v2970, 0.0
    %2979 = vadd.xlane.f32.xlu0 %v2978
    %v2980 = vpop.xlane.xlu0 %2979
    %v2981 = vld [vmem:[#allocation2] sm:$0x1]
    %v2983 = vlaneseq
    %v2984 = vshrl.u32 %v2983, 7
    %v2985 = vsub.s32 0, %v2984
    %v2986 = vrot.slane %v2981, %v2985
    %v2988 = vadd.f32 %v2976, %v2986
    %v2989 = vadd.f32 %v2980, %v2986
    %v2990 = vxor.u32 %v2988, 2147483648
    %v2991 = vxor.u32 %v2989, 2147483648
    %v2992 = vmul.f32 %v2990, 1.442695
    %v2993 = vpow.pop %v2992
    %v2994 = vmul.f32 %v2991, 1.442695
    %v2995 = vpow.pop %v2994
    %v2996 = vadd.f32 %v2993, 1.0
    %v2997 = vadd.f32 %v2995, 1.0
    %v2998 = vrcp.pop %v2996
    %v2999 = vmul.f32 1.0, %v2998
    %v3000 = vrcp.pop %v2997
    %v3001 = vmul.f32 1.0, %v3000
    %vm3002 = vcmask 7175
    %3003 = vst.msk [vmem:[%s7 - $0x7] sm:$0x80] %vm3002, %v2999
    %vm3004 = vcmask 6144
    %3005 = vst.msk [vmem:[%s7 + $0x1] sm:$0x7f] %vm3004, %v3001
    %v3014 = vrot.slane %v2865, 7
    %v3015 = vrot.slane %v2866, 6
    %v3016 = vsel %vm522, %v3015, %v3014
    %v3017 = vrot.slane %v2867, 5
    %v3018 = vsel %vm525, %v3017, %v3016
    %v3019 = vrot.slane %v2868, 4
    %v3020 = vsel %vm528, %v3019, %v3018
    %v3021 = vrot.slane %v2869, 3
    %v3022 = vsel %vm531, %v3021, %v3020
    %v3023 = vrot.slane %v2870, 2
    %v3024 = vsel %vm534, %v3023, %v3022
    %v3025 = vrot.slane %v2871, 1
    %v3026 = vsel %vm537, %v3025, %v3024
    %3027 = vrot.lane.b32.xlu0 %v2864, 64
    %v3028 = vpop.permute.xlu0 %3027
    %3029 = vrot.lane.b32.xlu0 %v3026, 64
    %v3030 = vpop.permute.xlu0 %3029
    %3033 = vst.msk [vmem:[#allocation9 - $0x7] sm:$0x80] %vm2973, %v3028
    %3034 = vst.msk [vmem:[#allocation9 + $0x1] sm:$0x7f] %vm2977, %v3030
    // Predicated region
    $region42: #{tpu_custom_call.1} parent=1 // pred_check
      _
    $region43: #{tpu_custom_call.1} parent=1 // pred_check_branch
      %3036 = sbr.rel (0) target = $region45
    $region44: #{tpu_custom_call.1} parent=1 // pred_region
      _
    $region45: #{tpu_custom_call.1} parent=1 // pred_fallthru
      _
    // Predicated region
    $region46: #{tpu_custom_call.1} parent=1 // pred_check
      _
    $region47: #{tpu_custom_call.1} parent=1 // pred_check_branch
      %3038 = sbr.rel (0) target = $region49
    $region48: #{tpu_custom_call.1} parent=1 // pred_region
      %s3040 = ssub.s32 128, 128
      %3041 = vsyncadd [#allocation5], %s3040
      %s3043 = sshll.u32 [#allocation9], 4
      %s3044 = int_to_ptr.vmem [resolvable:$true] %s3043
      %3046 = dma.vmem_to_hbm [thread:$0]  %s3044, 128, %s8, [#allocation5]
    $region49: #{tpu_custom_call.1} parent=1 // pred_fallthru
      _
    // Predicated region
    $region50: #{tpu_custom_call.1} parent=1 // pred_check
      _
    $region51: #{tpu_custom_call.1} parent=1 // pred_check_branch
      %3048 = sbr.rel (0) target = $region53
    $region52: #{tpu_custom_call.1} parent=1 // pred_region
      _
    $region53: #{tpu_custom_call.1} parent=1 // pred_fallthru
      _
    // Predicated region
    $region54: #{tpu_custom_call.1} parent=1 // pred_check
      _
    $region55: #{tpu_custom_call.1} parent=1 // pred_check_branch
      %3050 = sbr.rel (0) target = $region57
    $region56: #{tpu_custom_call.1} parent=1 // pred_region
      %3051 = dma.done [#allocation5], 128
    $region57: #{tpu_custom_call.1} parent=1 // pred_fallthru
      _
    %3052 = vsyncpa [#allocation4], 1
    %3053 = vsyncpa [#allocation7], 1
    %3054 = vsyncpa [#allocation5], 1

</llo_original>
